<compile_context>
chip_gen: v5e
topology: v5e:2x2
jax: 0.10.0
libtpu: 0.0.40
codegen_flags: <defaults>
</compile_context>

<pallas_src>
import functools

import jax
import jax.numpy as jnp
from jax.experimental import pallas as pl
from jax.experimental.pallas import tpu as pltpu

_HIGHEST = jax.lax.Precision.HIGHEST


def _round_up(x, m):
    return ((x + m - 1) // m) * m


def _mm(a, b):
    return jnp.matmul(a, b, precision=_HIGHEST)


def _cca_cov_kernel(h1_ref, h2_ref, out_ref,
                    g11, g22, g12, s1, s2,
                    *, batch, epsilon, tile_b):
    step = pl.program_id(0)

    @pl.when(step == 0)
    def _():
        g11[...] = jnp.zeros_like(g11)
        g22[...] = jnp.zeros_like(g22)
        g12[...] = jnp.zeros_like(g12)
        s1[...] = jnp.zeros_like(s1)
        s2[...] = jnp.zeros_like(s2)

    h1 = h1_ref[...].astype(jnp.float32)      # (TB, D)
    h2 = h2_ref[...].astype(jnp.float32)      # (TB, D)

    # Mask rows past the true batch (ragged last tile); no-op when tiles divide B.
    row = jax.lax.broadcasted_iota(jnp.int32, h1.shape, 0) + step * tile_b
    valid = row < batch
    h1 = jnp.where(valid, h1, 0.0)
    h2 = jnp.where(valid, h2, 0.0)

    contract = (((0,), (0,)), ((), ()))       # contract over the batch axis
    dot = functools.partial(jax.lax.dot_general,
                            dimension_numbers=contract,
                            precision=_HIGHEST,
                            preferred_element_type=jnp.float32)

    g11[...] += dot(h1, h1)                   # (D, D) Gram accumulators
    g22[...] += dot(h2, h2)
    g12[...] += dot(h1, h2)
    s1[...] += jnp.sum(h1, axis=0, keepdims=True)   # (1, D) column sums
    s2[...] += jnp.sum(h2, axis=0, keepdims=True)

    @pl.when(step == pl.num_programs(0) - 1)
    def _():
        bsz = jnp.float32(batch)
        denom = jnp.float32(batch - 1)
        o11 = dot(s1[...], s1[...])           # outer products s s^T
        o22 = dot(s2[...], s2[...])
        o12 = dot(s1[...], s2[...])
        d = g11.shape[0]
        ri = jax.lax.broadcasted_iota(jnp.int32, (d, d), 0)
        ci = jax.lax.broadcasted_iota(jnp.int32, (d, d), 1)
        eye_eps = jnp.where(ri == ci, jnp.float32(epsilon), jnp.float32(0.0))
        out_ref[0, :, :] = (g11[...] - o11 / bsz) / denom + eye_eps
        out_ref[1, :, :] = (g22[...] - o22 / bsz) / denom + eye_eps
        out_ref[2, :, :] = (g12[...] - o12 / bsz) / denom


def cca_covariances(h1, h2, epsilon, tile_b=None):
    """Returns (Sigma_11, Sigma_22, Sigma_12) computed by the Pallas kernel."""
    b, d = h1.shape
    assert h2.shape == (b, d)
    if tile_b is None:
        # ~1 MiB of rows per input block, multiple of 8, capped at the batch.
        target = max(8, _round_up((1 << 20) // max(4 * d, 1), 8))
        tile_b = min(_round_up(b, 8), target)
    grid = pl.cdiv(b, tile_b)

    sigmas = pl.pallas_call(
        functools.partial(_cca_cov_kernel, batch=b, epsilon=float(epsilon),
                          tile_b=tile_b),
        out_shape=jax.ShapeDtypeStruct((3, d, d), jnp.float32),
        grid_spec=pltpu.PrefetchScalarGridSpec(
            num_scalar_prefetch=0,
            grid=(grid,),
            in_specs=[pl.BlockSpec((tile_b, d), lambda i: (i, 0)),
                      pl.BlockSpec((tile_b, d), lambda i: (i, 0))],
            out_specs=pl.BlockSpec((3, d, d), lambda i: (0, 0, 0)),
            scratch_shapes=[pltpu.VMEM((d, d), jnp.float32),
                            pltpu.VMEM((d, d), jnp.float32),
                            pltpu.VMEM((d, d), jnp.float32),
                            pltpu.VMEM((1, d), jnp.float32),
                            pltpu.VMEM((1, d), jnp.float32)],
        ),
        compiler_params=pltpu.CompilerParams(
            dimension_semantics=("arbitrary",)),
    )(h1, h2)
    return sigmas[0], sigmas[1], sigmas[2]


def _cca_loss_from_covariances(s11, s22, s12):
    # TODO(synk): dense SVD / matrix inverse-sqrt has no Pallas TPU equivalent;
    # these small (D, D) factorizations run as plain XLA ops.
    u1, sv1, v1h = jnp.linalg.svd(s11)
    s11_inv_sqrt = _mm(_mm(u1, jnp.diag(1.0 / jnp.sqrt(sv1))), v1h.T)
    u2, sv2, v2h = jnp.linalg.svd(s22)
    s22_inv_sqrt = _mm(_mm(u2, jnp.diag(1.0 / jnp.sqrt(sv2))), v2h.T)
    c = _mm(_mm(s11_inv_sqrt, s12), s22_inv_sqrt)
    corr = jnp.linalg.svd(c, compute_uv=False)
    return -jnp.sum(corr)


def cca_loss(h1, h2, epsilon=1e-4, tile_b=None):
    s11, s22, s12 = cca_covariances(h1, h2, epsilon, tile_b=tile_b)
    return _cca_loss_from_covariances(s11, s22, s12)


def _reference_covariances(h1, h2, epsilon):
    """Pure-JAX mirror of the PyTorch covariance construction."""
    b, d = h1.shape
    h1c = h1 - jnp.mean(h1, axis=0, keepdims=True)
    h2c = h2 - jnp.mean(h2, axis=0, keepdims=True)
    s11 = _mm(h1c.T, h1c) / (b - 1) + epsilon * jnp.eye(d, dtype=jnp.float32)
    s22 = _mm(h2c.T, h2c) / (b - 1) + epsilon * jnp.eye(d, dtype=jnp.float32)
    s12 = _mm(h1c.T, h2c) / (b - 1)
    return s11, s22, s12


if __name__ == "__main__":
    key = jax.random.PRNGKey(0)
    k1, k2 = jax.random.split(key)

    B, D = 128, 16          # (batch_size, feature_dim), B > D keeps Sigma well-conditioned
    EPS = 1e-4              # module default epsilon

    h1 = jax.random.normal(k1, (B, D), dtype=jnp.float32)
    h2 = jax.random.normal(k2, (B, D), dtype=jnp.float32)
    # Correlate the views so canonical correlations are non-trivial.
    h2 = 0.7 * h1 + 0.3 * h2

    loss = cca_loss(h1, h2, EPS, tile_b=32)   # 4 grid steps over the batch
    loss = jax.block_until_ready(loss)

    # Check the Pallas-produced covariances against a plain-JAX reference.
    s11_k, s22_k, s12_k = cca_covariances(h1, h2, EPS, tile_b=32)
    s11_r, s22_r, s12_r = _reference_covariances(h1, h2, EPS)
    assert jnp.allclose(s11_k, s11_r, rtol=1e-4, atol=1e-4)
    assert jnp.allclose(s22_k, s22_r, rtol=1e-4, atol=1e-4)
    assert jnp.allclose(s12_k, s12_r, rtol=1e-4, atol=1e-4)

    # End-to-end loss check (same SVD post-processing on reference covariances).
    ref_loss = _cca_loss_from_covariances(s11_r, s22_r, s12_r)
    ref_loss = jax.block_until_ready(ref_loss)
    assert jnp.allclose(loss, ref_loss, rtol=1e-3, atol=1e-3), (loss, ref_loss)

    print("KERNEL_OK")
</pallas_src>

<mosaic_0001>
module attributes {stable_mosaic.version = 11 : i64} {
  func.func @_cca_cov_kernel(%arg0: i32, %arg1: memref<32x16xf32, #tpu.memory_space<vmem>>, %arg2: memref<32x16xf32, #tpu.memory_space<vmem>>, %arg3: memref<3x16x16xf32, #tpu.memory_space<vmem>>, %arg4: memref<16x16xf32, #tpu.memory_space<vmem>>, %arg5: memref<16x16xf32, #tpu.memory_space<vmem>>, %arg6: memref<16x16xf32, #tpu.memory_space<vmem>>, %arg7: memref<1x16xf32, #tpu.memory_space<vmem>>, %arg8: memref<1x16xf32, #tpu.memory_space<vmem>>) attributes {dimension_semantics = [#tpu.dimension_semantics<arbitrary>], iteration_bounds = array<i64: 4>, scalar_prefetch = 0 : i64, scratch_operands = 5 : i64, tpu.core_type = #tpu.core_type<tc>, window_params = [{transform_indices = @transform_0, window_bounds = array<i64: 32, 16>}, {transform_indices = @transform_1, window_bounds = array<i64: 32, 16>}, {pipeline_mode = #tpu.pipeline_mode<synchronous>, transform_indices = @transform_2, window_bounds = array<i64: 3, 16, 16>}]} {
    %c0_i32 = arith.constant 0 : i32
    %0 = arith.cmpi eq, %arg0, %c0_i32 : i32
    %1 = arith.extui %0 : i1 to i32
    %c0_i32_0 = arith.constant 0 : i32
    %2 = arith.cmpi ne, %1, %c0_i32_0 : i32
    scf.if %2 {
      %cst_31 = arith.constant 0.000000e+00 : f32
      %40 = vector.broadcast %cst_31 : f32 to vector<16x16xf32>
      %c0_32 = arith.constant 0 : index
      %c0_33 = arith.constant 0 : index
      %41 = vector.load %arg4[%c0_32, %c0_33] : memref<16x16xf32, #tpu.memory_space<vmem>>, vector<16x16xf32>
      tpu.vector_store %arg4[%c0_32, %c0_33], %40 {strides = array<i32>} : memref<16x16xf32, #tpu.memory_space<vmem>>, vector<16x16xf32>,
      %cst_34 = arith.constant 0.000000e+00 : f32
      %42 = vector.broadcast %cst_34 : f32 to vector<16x16xf32>
      %c0_35 = arith.constant 0 : index
      %c0_36 = arith.constant 0 : index
      %43 = vector.load %arg5[%c0_35, %c0_36] : memref<16x16xf32, #tpu.memory_space<vmem>>, vector<16x16xf32>
      tpu.vector_store %arg5[%c0_35, %c0_36], %42 {strides = array<i32>} : memref<16x16xf32, #tpu.memory_space<vmem>>, vector<16x16xf32>,
      %cst_37 = arith.constant 0.000000e+00 : f32
      %44 = vector.broadcast %cst_37 : f32 to vector<16x16xf32>
      %c0_38 = arith.constant 0 : index
      %c0_39 = arith.constant 0 : index
      %45 = vector.load %arg6[%c0_38, %c0_39] : memref<16x16xf32, #tpu.memory_space<vmem>>, vector<16x16xf32>
      tpu.vector_store %arg6[%c0_38, %c0_39], %44 {strides = array<i32>} : memref<16x16xf32, #tpu.memory_space<vmem>>, vector<16x16xf32>,
      %cst_40 = arith.constant 0.000000e+00 : f32
      %46 = vector.broadcast %cst_40 : f32 to vector<1x16xf32>
      %c0_41 = arith.constant 0 : index
      %c0_42 = arith.constant 0 : index
      %47 = vector.load %arg7[%c0_41, %c0_42] : memref<1x16xf32, #tpu.memory_space<vmem>>, vector<1x16xf32>
      tpu.vector_store %arg7[%c0_41, %c0_42], %46 {strides = array<i32>} : memref<1x16xf32, #tpu.memory_space<vmem>>, vector<1x16xf32>,
      %cst_43 = arith.constant 0.000000e+00 : f32
      %48 = vector.broadcast %cst_43 : f32 to vector<1x16xf32>
      %c0_44 = arith.constant 0 : index
      %c0_45 = arith.constant 0 : index
      %49 = vector.load %arg8[%c0_44, %c0_45] : memref<1x16xf32, #tpu.memory_space<vmem>>, vector<1x16xf32>
      tpu.vector_store %arg8[%c0_44, %c0_45], %48 {strides = array<i32>} : memref<1x16xf32, #tpu.memory_space<vmem>>, vector<1x16xf32>,
    } else {
    }
    %c0 = arith.constant 0 : index
    %c0_1 = arith.constant 0 : index
    %3 = vector.load %arg1[%c0, %c0_1] : memref<32x16xf32, #tpu.memory_space<vmem>>, vector<32x16xf32>
    %c0_2 = arith.constant 0 : index
    %c0_3 = arith.constant 0 : index
    %4 = vector.load %arg2[%c0_2, %c0_3] : memref<32x16xf32, #tpu.memory_space<vmem>>, vector<32x16xf32>
    %5 = tpu.iota {dimensions = array<i32: 0>} : vector<32x16xi32>
    %c32_i32 = arith.constant 32 : i32
    %6 = arith.muli %arg0, %c32_i32 : i32
    %7 = vector.broadcast %6 : i32 to vector<32x16xi32>
    %8 = arith.addi %5, %7 : vector<32x16xi32>
    %c128_i32 = arith.constant 128 : i32
    %9 = vector.broadcast %c128_i32 : i32 to vector<32x16xi32>
    %10 = arith.cmpi slt, %8, %9 : vector<32x16xi32>
    %cst = arith.constant 0.000000e+00 : f32
    %11 = vector.broadcast %cst : f32 to vector<32x16xf32>
    %12 = arith.select %10, %3, %11 : vector<32x16xi1>, vector<32x16xf32>
    %cst_4 = arith.constant 0.000000e+00 : f32
    %13 = vector.broadcast %cst_4 : f32 to vector<32x16xf32>
    %14 = arith.select %10, %4, %13 : vector<32x16xi1>, vector<32x16xf32>
    %c0_5 = arith.constant 0 : index
    %c0_6 = arith.constant 0 : index
    %15 = vector.load %arg4[%c0_5, %c0_6] : memref<16x16xf32, #tpu.memory_space<vmem>>, vector<16x16xf32>
    %cst_7 = arith.constant dense<0.000000e+00> : vector<16x16xf32>
    %16 = tpu.matmul %12, %12, %cst_7 {dimension_numbers = #tpu.dot_dimension_numbers<[0], [0], [1], [1], [0, 1, 1, 1], [], []>, precision = #tpu.contract_precision<fp32>} : vector<32x16xf32>, vector<32x16xf32>, vector<16x16xf32> -> vector<16x16xf32>
    %17 = arith.addf %15, %16 : vector<16x16xf32>
    %c0_8 = arith.constant 0 : index
    %c0_9 = arith.constant 0 : index
    %18 = vector.load %arg4[%c0_8, %c0_9] : memref<16x16xf32, #tpu.memory_space<vmem>>, vector<16x16xf32>
    tpu.vector_store %arg4[%c0_8, %c0_9], %17 {strides = array<i32>} : memref<16x16xf32, #tpu.memory_space<vmem>>, vector<16x16xf32>,
    %c0_10 = arith.constant 0 : index
    %c0_11 = arith.constant 0 : index
    %19 = vector.load %arg5[%c0_10, %c0_11] : memref<16x16xf32, #tpu.memory_space<vmem>>, vector<16x16xf32>
    %cst_12 = arith.constant dense<0.000000e+00> : vector<16x16xf32>
    %20 = tpu.matmul %14, %14, %cst_12 {dimension_numbers = #tpu.dot_dimension_numbers<[0], [0], [1], [1], [0, 1, 1, 1], [], []>, precision = #tpu.contract_precision<fp32>} : vector<32x16xf32>, vector<32x16xf32>, vector<16x16xf32> -> vector<16x16xf32>
    %21 = arith.addf %19, %20 : vector<16x16xf32>
    %c0_13 = arith.constant 0 : index
    %c0_14 = arith.constant 0 : index
    %22 = vector.load %arg5[%c0_13, %c0_14] : memref<16x16xf32, #tpu.memory_space<vmem>>, vector<16x16xf32>
    tpu.vector_store %arg5[%c0_13, %c0_14], %21 {strides = array<i32>} : memref<16x16xf32, #tpu.memory_space<vmem>>, vector<16x16xf32>,
    %c0_15 = arith.constant 0 : index
    %c0_16 = arith.constant 0 : index
    %23 = vector.load %arg6[%c0_15, %c0_16] : memref<16x16xf32, #tpu.memory_space<vmem>>, vector<16x16xf32>
    %cst_17 = arith.constant dense<0.000000e+00> : vector<16x16xf32>
    %24 = tpu.matmul %12, %14, %cst_17 {dimension_numbers = #tpu.dot_dimension_numbers<[0], [0], [1], [1], [0, 1, 1, 1], [], []>, precision = #tpu.contract_precision<fp32>} : vector<32x16xf32>, vector<32x16xf32>, vector<16x16xf32> -> vector<16x16xf32>
    %25 = arith.addf %23, %24 : vector<16x16xf32>
    %c0_18 = arith.constant 0 : index
    %c0_19 = arith.constant 0 : index
    %26 = vector.load %arg6[%c0_18, %c0_19] : memref<16x16xf32, #tpu.memory_space<vmem>>, vector<16x16xf32>
    tpu.vector_store %arg6[%c0_18, %c0_19], %25 {strides = array<i32>} : memref<16x16xf32, #tpu.memory_space<vmem>>, vector<16x16xf32>,
    %c0_20 = arith.constant 0 : index
    %c0_21 = arith.constant 0 : index
    %27 = vector.load %arg7[%c0_20, %c0_21] : memref<1x16xf32, #tpu.memory_space<vmem>>, vector<1x16xf32>
    %cst_22 = arith.constant dense<0.000000e+00> : vector<16xf32>
    %28 = vector.multi_reduction <add>, %12, %cst_22 [0] : vector<32x16xf32> to vector<16xf32>
    %29 = vector.shape_cast %28 : vector<16xf32> to vector<1x16xf32>
    %30 = arith.addf %27, %29 : vector<1x16xf32>
    %c0_23 = arith.constant 0 : index
    %c0_24 = arith.constant 0 : index
    %31 = vector.load %arg7[%c0_23, %c0_24] : memref<1x16xf32, #tpu.memory_space<vmem>>, vector<1x16xf32>
    tpu.vector_store %arg7[%c0_23, %c0_24], %30 {strides = array<i32>} : memref<1x16xf32, #tpu.memory_space<vmem>>, vector<1x16xf32>,
    %c0_25 = arith.constant 0 : index
    %c0_26 = arith.constant 0 : index
    %32 = vector.load %arg8[%c0_25, %c0_26] : memref<1x16xf32, #tpu.memory_space<vmem>>, vector<1x16xf32>
    %cst_27 = arith.constant dense<0.000000e+00> : vector<16xf32>
    %33 = vector.multi_reduction <add>, %14, %cst_27 [0] : vector<32x16xf32> to vector<16xf32>
    %34 = vector.shape_cast %33 : vector<16xf32> to vector<1x16xf32>
    %35 = arith.addf %32, %34 : vector<1x16xf32>
    %c0_28 = arith.constant 0 : index
    %c0_29 = arith.constant 0 : index
    %36 = vector.load %arg8[%c0_28, %c0_29] : memref<1x16xf32, #tpu.memory_space<vmem>>, vector<1x16xf32>
    tpu.vector_store %arg8[%c0_28, %c0_29], %35 {strides = array<i32>} : memref<1x16xf32, #tpu.memory_space<vmem>>, vector<1x16xf32>,
    %c3_i32 = arith.constant 3 : i32
    %37 = arith.cmpi eq, %arg0, %c3_i32 : i32
    %38 = arith.extui %37 : i1 to i32
    %c0_i32_30 = arith.constant 0 : i32
    %39 = arith.cmpi ne, %38, %c0_i32_30 : i32
    scf.if %39 {
      %c0_31 = arith.constant 0 : index
      %c0_32 = arith.constant 0 : index
      %40 = vector.load %arg7[%c0_31, %c0_32] : memref<1x16xf32, #tpu.memory_space<vmem>>, vector<1x16xf32>
      %c0_33 = arith.constant 0 : index
      %c0_34 = arith.constant 0 : index
      %41 = vector.load %arg7[%c0_33, %c0_34] : memref<1x16xf32, #tpu.memory_space<vmem>>, vector<1x16xf32>
      %cst_35 = arith.constant dense<0.000000e+00> : vector<16x16xf32>
      %42 = tpu.matmul %40, %41, %cst_35 {dimension_numbers = #tpu.dot_dimension_numbers<[0], [0], [1], [1], [0, 1, 1, 1], [], []>, precision = #tpu.contract_precision<fp32>} : vector<1x16xf32>, vector<1x16xf32>, vector<16x16xf32> -> vector<16x16xf32>
      %c0_36 = arith.constant 0 : index
      %c0_37 = arith.constant 0 : index
      %43 = vector.load %arg8[%c0_36, %c0_37] : memref<1x16xf32, #tpu.memory_space<vmem>>, vector<1x16xf32>
      %c0_38 = arith.constant 0 : index
      %c0_39 = arith.constant 0 : index
      %44 = vector.load %arg8[%c0_38, %c0_39] : memref<1x16xf32, #tpu.memory_space<vmem>>, vector<1x16xf32>
      %cst_40 = arith.constant dense<0.000000e+00> : vector<16x16xf32>
      %45 = tpu.matmul %43, %44, %cst_40 {dimension_numbers = #tpu.dot_dimension_numbers<[0], [0], [1], [1], [0, 1, 1, 1], [], []>, precision = #tpu.contract_precision<fp32>} : vector<1x16xf32>, vector<1x16xf32>, vector<16x16xf32> -> vector<16x16xf32>
      %c0_41 = arith.constant 0 : index
      %c0_42 = arith.constant 0 : index
      %46 = vector.load %arg7[%c0_41, %c0_42] : memref<1x16xf32, #tpu.memory_space<vmem>>, vector<1x16xf32>
      %c0_43 = arith.constant 0 : index
      %c0_44 = arith.constant 0 : index
      %47 = vector.load %arg8[%c0_43, %c0_44] : memref<1x16xf32, #tpu.memory_space<vmem>>, vector<1x16xf32>
      %cst_45 = arith.constant dense<0.000000e+00> : vector<16x16xf32>
      %48 = tpu.matmul %46, %47, %cst_45 {dimension_numbers = #tpu.dot_dimension_numbers<[0], [0], [1], [1], [0, 1, 1, 1], [], []>, precision = #tpu.contract_precision<fp32>} : vector<1x16xf32>, vector<1x16xf32>, vector<16x16xf32> -> vector<16x16xf32>
      %49 = tpu.iota {dimensions = array<i32: 0>} : vector<16x16xi32>
      %50 = tpu.iota {dimensions = array<i32: 1>} : vector<16x16xi32>
      %51 = arith.cmpi eq, %49, %50 : vector<16x16xi32>
      %cst_46 = arith.constant 9.99999974E-5 : f32
      %cst_47 = arith.constant 0.000000e+00 : f32
      %52 = vector.broadcast %cst_46 : f32 to vector<16x16xf32>
      %53 = vector.broadcast %cst_47 : f32 to vector<16x16xf32>
      %54 = arith.select %51, %52, %53 : vector<16x16xi1>, vector<16x16xf32>
      %c0_48 = arith.constant 0 : index
      %c0_49 = arith.constant 0 : index
      %55 = vector.load %arg4[%c0_48, %c0_49] : memref<16x16xf32, #tpu.memory_space<vmem>>, vector<16x16xf32>
      %cst_50 = arith.constant 1.280000e+02 : f32
      %56 = vector.broadcast %cst_50 : f32 to vector<16x16xf32>
      %57 = arith.divf %42, %56 : vector<16x16xf32>
      %58 = arith.subf %55, %57 : vector<16x16xf32>
      %cst_51 = arith.constant 1.270000e+02 : f32
      %59 = vector.broadcast %cst_51 : f32 to vector<16x16xf32>
      %60 = arith.divf %58, %59 : vector<16x16xf32>
      %61 = arith.addf %60, %54 : vector<16x16xf32>
      %c0_52 = arith.constant 0 : index
      %c0_53 = arith.constant 0 : index
      %c0_54 = arith.constant 0 : index
      %62 = vector.load %arg3[%c0_52, %c0_53, %c0_54] : memref<3x16x16xf32, #tpu.memory_space<vmem>>, vector<1x16x16xf32>
      %63 = vector.shape_cast %62 : vector<1x16x16xf32> to vector<16x16xf32>
      %64 = vector.shape_cast %61 : vector<16x16xf32> to vector<1x16x16xf32>
      tpu.vector_store %arg3[%c0_52, %c0_53, %c0_54], %64 {strides = array<i32>} : memref<3x16x16xf32, #tpu.memory_space<vmem>>, vector<1x16x16xf32>,
      %c0_55 = arith.constant 0 : index
      %c0_56 = arith.constant 0 : index
      %65 = vector.load %arg5[%c0_55, %c0_56] : memref<16x16xf32, #tpu.memory_space<vmem>>, vector<16x16xf32>
      %cst_57 = arith.constant 1.280000e+02 : f32
      %66 = vector.broadcast %cst_57 : f32 to vector<16x16xf32>
      %67 = arith.divf %45, %66 : vector<16x16xf32>
      %68 = arith.subf %65, %67 : vector<16x16xf32>
      %cst_58 = arith.constant 1.270000e+02 : f32
      %69 = vector.broadcast %cst_58 : f32 to vector<16x16xf32>
      %70 = arith.divf %68, %69 : vector<16x16xf32>
      %71 = arith.addf %70, %54 : vector<16x16xf32>
      %c1 = arith.constant 1 : index
      %c0_59 = arith.constant 0 : index
      %c0_60 = arith.constant 0 : index
      %72 = vector.load %arg3[%c1, %c0_59, %c0_60] : memref<3x16x16xf32, #tpu.memory_space<vmem>>, vector<1x16x16xf32>
      %73 = vector.shape_cast %72 : vector<1x16x16xf32> to vector<16x16xf32>
      %74 = vector.shape_cast %71 : vector<16x16xf32> to vector<1x16x16xf32>
      tpu.vector_store %arg3[%c1, %c0_59, %c0_60], %74 {strides = array<i32>} : memref<3x16x16xf32, #tpu.memory_space<vmem>>, vector<1x16x16xf32>,
      %c0_61 = arith.constant 0 : index
      %c0_62 = arith.constant 0 : index
      %75 = vector.load %arg6[%c0_61, %c0_62] : memref<16x16xf32, #tpu.memory_space<vmem>>, vector<16x16xf32>
      %cst_63 = arith.constant 1.280000e+02 : f32
      %76 = vector.broadcast %cst_63 : f32 to vector<16x16xf32>
      %77 = arith.divf %48, %76 : vector<16x16xf32>
      %78 = arith.subf %75, %77 : vector<16x16xf32>
      %cst_64 = arith.constant 1.270000e+02 : f32
      %79 = vector.broadcast %cst_64 : f32 to vector<16x16xf32>
      %80 = arith.divf %78, %79 : vector<16x16xf32>
      %c2 = arith.constant 2 : index
      %c0_65 = arith.constant 0 : index
      %c0_66 = arith.constant 0 : index
      %81 = vector.load %arg3[%c2, %c0_65, %c0_66] : memref<3x16x16xf32, #tpu.memory_space<vmem>>, vector<1x16x16xf32>
      %82 = vector.shape_cast %81 : vector<1x16x16xf32> to vector<16x16xf32>
      %83 = vector.shape_cast %80 : vector<16x16xf32> to vector<1x16x16xf32>
      tpu.vector_store %arg3[%c2, %c0_65, %c0_66], %83 {strides = array<i32>} : memref<3x16x16xf32, #tpu.memory_space<vmem>>, vector<1x16x16xf32>,
    } else {
    }
    return
  }
  func.func @transform_0(%arg0: i32) -> (i32, i32) {
    %c0_i32 = arith.constant 0 : i32
    %c0_i32_0 = arith.constant 0 : i32
    return %arg0, %c0_i32 : i32, i32
  }
  func.func @transform_1(%arg0: i32) -> (i32, i32) {
    %c0_i32 = arith.constant 0 : i32
    %c0_i32_0 = arith.constant 0 : i32
    return %arg0, %c0_i32 : i32, i32
  }
  func.func @transform_2(%arg0: i32) -> (i32, i32, i32) {
    %c0_i32 = arith.constant 0 : i32
    %c0_i32_0 = arith.constant 0 : i32
    %c0_i32_1 = arith.constant 0 : i32
    %c0_i32_2 = arith.constant 0 : i32
    return %c0_i32, %c0_i32_0, %c0_i32_1 : i32, i32, i32
  }
}

</mosaic_0001>

<llo_original>
// kernel: tpu_custom_call.1
$region0: #{tpu_custom_call.1}
  #allocation0 [shape = 'u32[]', space=smem, size = 0x4, offset = 0x4, fixed_abs, tag = 'smem constant byte address 0x4 - core index']
  #allocation1 [shape = 'u32[72,128]{1,0:T(1,128)}', space=vmem, size = 0x9000, scoped, tag = 'internal scratch']
  #allocation2 [shape = 'f32[16,16]{1,0:T(8,128)}', space=vmem, size = 0x2000, scoped, tag = 'scratch operand']
  #allocation3 [shape = 'f32[16,16]{1,0:T(8,128)}', space=vmem, size = 0x2000, scoped, tag = 'scratch operand']
  #allocation4 [shape = 'f32[16,16]{1,0:T(8,128)}', space=vmem, size = 0x2000, scoped, tag = 'scratch operand']
  #allocation5 [shape = 'f32[1,16]{1,0:T(1,128)}', space=vmem, size = 0x200, scoped, tag = 'scratch operand']
  #allocation6 [shape = 'f32[1,16]{1,0:T(1,128)}', space=vmem, size = 0x200, scoped, tag = 'scratch operand']
  %s0 = inlined_call_operand.vmem [shape: f32[128,16], index: 0, kind: input, shape index: {}]
  %s1 = inlined_call_operand.vmem [shape: f32[128,16], index: 1, kind: input, shape index: {}]
  %s2 = inlined_call_operand.hbm [shape: f32[3,16,16], index: 2, kind: output, shape index: {}]
  %s3 = sld [smem:[#allocation0]]
  $region49: #{tpu_custom_call.1} parent=0
    _
  %s5 = ssub.s32 1, %s3
  %s6 = scalar_select 0, %s5, %s3
  $region1: #{tpu_custom_call.1} parent=0
    #allocation7 [shape = 'u8[24576]{0}', space=vmem, size = 0x6000, scoped, tag = 'output window, operand 0, single buffered']
    #allocation8 [shape = 's32[2]{0}', space=sflag, size = 0x8, scoped, tag = 'scoped memory for tpu_custom_call.1']
    %7 = vsyncpa [#allocation8], 0
    loop: start=0, step=1, limit=6
    $region2: #{tpu_custom_call.1} parent=1 // loop_pre_header
      _
    $region3: #{tpu_custom_call.1} parent=1 // loop_header
      %s9 = sphi 0, %s13
      %p10 = scmp.ge.s32.totalorder %s9, 6
      %s19 = sphi 0, %s21
      %s22 = sphi 0, %s19
      %s23 = sphi 0, %s22
      %s39 = sphi 0, %s23
      %s45 = sphi 0, %s47
      %s48 = sphi 0, %s45
      %s49 = sphi 0, %s48
      %s65 = sphi 0, %s49
      %s69 = sphi 0, %s69
      %s71 = sphi 0, %s69
      %s72 = sphi 0, %s71
      %s86 = sphi 0, %s72
    $region4: #{tpu_custom_call.1} parent=1 // loop_header_branch
      %12 = sbr.rel (%p10) target = $region8
    $region5: #{tpu_custom_call.1} parent=1 // loop_body
      %s14 = ssub.s32 %s9, 1
      %s15 = ssub.s32 %s9, 2
      %s16 = sadd.s32 %s9, 1
      %s17 = ssub.s32 %s9, %s16
      %p18 = scmp.eq.s32.totalorder %s17, 0
      %s20 = sadd.s32 %s19, 1
      %s21 = scalar_select %p18, %s19, %s20
      %p24 = pneg %p18
      %p25 = scmp.eq.s32.totalorder %s9, 3
      %p26 = por %p24, %p25
      %p27 = scmp.ne.s32.totalorder %s19, %s22
      %p28 = scmp.eq.s32.totalorder %s9, 0
      %p29 = por %p27, %p28
      %p30 = scmp.ne.s32.totalorder %s19, %s22
      %p31 = scmp.eq.s32.totalorder %s14, 3
      %p32 = por %p30, %p31
      %p33 = scmp.ne.s32.totalorder %s22, %s23
      %p34 = scmp.eq.s32.totalorder %s14, 0
      %p35 = por %p33, %p34
      %p36 = scmp.ne.s32.totalorder %s22, %s23
      %p37 = scmp.eq.s32.totalorder %s15, 3
      %p38 = por %p36, %p37
      %p40 = scmp.ne.s32.totalorder %s23, %s39
      %p41 = scmp.eq.s32.totalorder %s15, 0
      %p42 = por %p40, %p41
      %s43 = ssub.s32 %s9, %s16
      %p44 = scmp.eq.s32.totalorder %s43, 0
      %s46 = sadd.s32 %s45, 1
      %s47 = scalar_select %p44, %s45, %s46
      %p50 = pneg %p44
      %p51 = scmp.eq.s32.totalorder %s9, 3
      %p52 = por %p50, %p51
      %p53 = scmp.ne.s32.totalorder %s45, %s48
      %p54 = scmp.eq.s32.totalorder %s9, 0
      %p55 = por %p53, %p54
      %p56 = scmp.ne.s32.totalorder %s45, %s48
      %p57 = scmp.eq.s32.totalorder %s14, 3
      %p58 = por %p56, %p57
      %p59 = scmp.ne.s32.totalorder %s48, %s49
      %p60 = scmp.eq.s32.totalorder %s14, 0
      %p61 = por %p59, %p60
      %p62 = scmp.ne.s32.totalorder %s48, %s49
      %p63 = scmp.eq.s32.totalorder %s15, 3
      %p64 = por %p62, %p63
      %p66 = scmp.ne.s32.totalorder %s49, %s65
      %p67 = scmp.eq.s32.totalorder %s15, 0
      %p68 = por %p66, %p67
      %s70 = sadd.s32 %s69, 1
      %p73 = scmp.eq.s32.totalorder %s9, 3
      %p74 = scmp.ne.s32.totalorder %s69, %s71
      %p75 = scmp.eq.s32.totalorder %s9, 0
      %p76 = por %p74, %p75
      %p77 = scmp.ne.s32.totalorder %s69, %s71
      %p78 = scmp.eq.s32.totalorder %s14, 3
      %p79 = por %p77, %p78
      %p80 = scmp.ne.s32.totalorder %s71, %s72
      %p81 = scmp.eq.s32.totalorder %s14, 0
      %p82 = por %p80, %p81
      %p83 = scmp.ne.s32.totalorder %s71, %s72
      %p84 = scmp.eq.s32.totalorder %s15, 3
      %p85 = por %p83, %p84
      %p87 = scmp.ne.s32.totalorder %s72, %s86
      %p88 = scmp.eq.s32.totalorder %s15, 0
      %p89 = por %p87, %p88
      %p90 = scmp.le.s32.totalorder 1, %s9
      %p91 = scmp.lt.s32.totalorder %s9, 5
      %p92 = pnand %p90, %p91
      %p93 = pneg %p92
      // Predicated region
      $region9: #{tpu_custom_call.1} parent=5 // pred_check
        _
      $region10: #{tpu_custom_call.1} parent=5 // pred_check_branch
        %95 = sbr.rel (%p92) target = $region12
      $region11: #{tpu_custom_call.1} parent=5 // pred_region
        %s96 = ssub.s32 %s9, 1
      $region12: #{tpu_custom_call.1} parent=5 // pred_fallthru
        _
      %p97 = scmp.lt.s32.totalorder %s9, 4
      // Predicated region
      $region13: #{tpu_custom_call.1} parent=5 // pred_check
        %p98 = pneg %p97
      $region14: #{tpu_custom_call.1} parent=5 // pred_check_branch
        %100 = sbr.rel (%p98) target = $region16
      $region15: #{tpu_custom_call.1} parent=5 // pred_region
        // Predicated region
        $region17: #{tpu_custom_call.1} parent=15 // pred_check
          %p101 = pneg %p29
        $region18: #{tpu_custom_call.1} parent=15 // pred_check_branch
          %103 = sbr.rel (%p101) target = $region20
        $region19: #{tpu_custom_call.1} parent=15 // pred_region
          %s104 = smul.u32 4, %s9
          %p105 = scmp.lt.s32.totalorder %s104, 15
          %s106 = scalar_select %p105, %s104, 15
          %s107 = smul.addr %s106, 8
          %s108 = scalar_lea.vmem %s0, %s107
          %s109 = smul.u32 4, %s9
        $region20: #{tpu_custom_call.1} parent=15 // pred_fallthru
          _
        // Predicated region
        $region21: #{tpu_custom_call.1} parent=15 // pred_check
          %p110 = pneg %p55
        $region22: #{tpu_custom_call.1} parent=15 // pred_check_branch
          %112 = sbr.rel (%p110) target = $region24
        $region23: #{tpu_custom_call.1} parent=15 // pred_region
          %s113 = smul.u32 4, %s9
          %p114 = scmp.lt.s32.totalorder %s113, 15
          %s115 = scalar_select %p114, %s113, 15
          %s116 = smul.addr %s115, 8
          %s117 = scalar_lea.vmem %s1, %s116
          %s118 = smul.u32 4, %s9
        $region24: #{tpu_custom_call.1} parent=15 // pred_fallthru
          _
      $region16: #{tpu_custom_call.1} parent=5 // pred_fallthru
        _
      %p119 = scmp.le.s32.totalorder 1, %s9
      %p120 = scmp.lt.s32.totalorder %s9, 5
      %p121 = pnand %p119, %p120
      %p122 = pneg %p121
      // Predicated region
      $region25: #{tpu_custom_call.1} parent=5 // pred_check
        _
      $region26: #{tpu_custom_call.1} parent=5 // pred_check_branch
        %124 = sbr.rel (%p121) target = $region28
      $region27: #{tpu_custom_call.1} parent=5 // pred_region
        %s125 = ssub.s32 %s9, 1
        %s126 = smul.u32 4, %s14
        %p127 = scmp.lt.s32.totalorder %s126, 15
        %s128 = scalar_select %p127, %s126, 15
        %s129 = smul.addr %s128, 8
        %s130 = scalar_lea.vmem %s0, %s129
        %p131 = pneg %p35
        %p132 = pneg %p32
        %s133 = smul.u32 4, %s14
        %p134 = scmp.lt.s32.totalorder %s133, 15
        %s135 = scalar_select %p134, %s133, 15
        %s136 = smul.addr %s135, 8
        %s137 = scalar_lea.vmem %s1, %s136
        %p138 = pneg %p61
        %p139 = pneg %p58
        %p140 = pneg %p82
        %p141 = pneg %p79
        %s142 = smul.u32 4, %s14
        %p143 = scmp.lt.s32.totalorder %s142, 15
        %s144 = scalar_select %p143, %s142, 15
        %s145 = smul.addr %s144, 8
        %s146 = scalar_lea.vmem %s0, %s145
        %s147 = smul.u32 4, %s14
        %s148 = smul.u32 4, %s14
        %p149 = scmp.lt.s32.totalorder %s148, 15
        %s150 = scalar_select %p149, %s148, 15
        %s151 = smul.addr %s150, 8
        %s152 = scalar_lea.vmem %s1, %s151
        %s153 = smul.u32 4, %s14
        %p154 = scmp.eq.s32.totalorder %s14, 0
        // Predicated region
        $region29: #{tpu_custom_call.1} parent=27 // pred_check
          %p155 = pneg %p154
        $region30: #{tpu_custom_call.1} parent=27 // pred_check_branch
          %157 = sbr.rel (%p155) target = $region32
        $region31: #{tpu_custom_call.1} parent=27 // pred_region
          %vm158 = vcmask 130048
          %159 = vst.msk [vmem:[#allocation2] sm:$0xff] %vm158, 0.0
          %160 = vst.msk [vmem:[#allocation2 + $0x8] sm:$0xff] %vm158, 0.0
          %161 = vst.msk [vmem:[#allocation3] sm:$0xff] %vm158, 0.0
          %162 = vst.msk [vmem:[#allocation3 + $0x8] sm:$0xff] %vm158, 0.0
          %163 = vst.msk [vmem:[#allocation4] sm:$0xff] %vm158, 0.0
          %164 = vst.msk [vmem:[#allocation4 + $0x8] sm:$0xff] %vm158, 0.0
          %vm165 = vcmask 122880
          %166 = vst.msk [vmem:[#allocation5] sm:$0x1] %vm165, 0.0
          %167 = vst.msk [vmem:[#allocation6] sm:$0x1] %vm165, 0.0
        $region32: #{tpu_custom_call.1} parent=27 // pred_fallthru
          _
        %v168 = vld [vmem:[%s146] sm:$0xff]
        %v169 = vld [vmem:[%s146 + $0x8] sm:$0xff]
        %v170 = vld [vmem:[%s146 + $0x10] sm:$0xff]
        %v171 = vld [vmem:[%s146 + $0x18] sm:$0xff]
        %v172 = vld [vmem:[%s152] sm:$0xff]
        %v173 = vld [vmem:[%s152 + $0x8] sm:$0xff]
        %v174 = vld [vmem:[%s152 + $0x10] sm:$0xff]
        %v175 = vld [vmem:[%s152 + $0x18] sm:$0xff]
        %v176 = vlaneseq
        %v177 = vshrl.u32 %v176, 7
        %v178 = vadd.s32 %v177, 8
        %v179 = vadd.s32 %v177, 16
        %v180 = vadd.s32 %v177, 24
        %s181 = smul.u32 %s14, 32
        %v182 = vstv %s181
        %v183 = vadd.s32 %v177, %v182
        %v184 = vadd.s32 %v178, %v182
        %v185 = vadd.s32 %v179, %v182
        %v186 = vadd.s32 %v180, %v182
        %vm187 = vcmp.lt.s32.totalorder %v183, 128
        %vm188 = vcmp.lt.s32.totalorder %v184, 128
        %vm189 = vcmp.lt.s32.totalorder %v185, 128
        %vm190 = vcmp.lt.s32.totalorder %v186, 128
        %v191 = vsel %vm187, %v168, 0.0
        %v192 = vsel %vm188, %v169, 0.0
        %v193 = vsel %vm189, %v170, 0.0
        %v194 = vsel %vm190, %v171, 0.0
        %v195 = vsel %vm187, %v172, 0.0
        %v196 = vsel %vm188, %v173, 0.0
        %v197 = vsel %vm189, %v174, 0.0
        %v198 = vsel %vm190, %v175, 0.0
        %v199 = vld [vmem:[#allocation2] sm:$0xff]
        %v200 = vld [vmem:[#allocation2 + $0x8] sm:$0xff]
        %201 = vxpose.xlu0.b32.start [1/16] %v191, 128
        %202 = vxpose.xlu0.b32.cont [2/16] %v192, 128
        %203 = vxpose.xlu0.b32.cont [3/16] %v193, 128
        %204 = vxpose.xlu0.b32.cont [4/16] %v194, 128
        %205 = vxpose.xlu0.b32.cont [5/16] 0.0, 128
        %206 = vxpose.xlu0.b32.cont [6/16] 0.0, 128
        %207 = vxpose.xlu0.b32.cont [7/16] 0.0, 128
        %208 = vxpose.xlu0.b32.cont [8/16] 0.0, 128
        %209 = vxpose.xlu0.b32.cont [9/16] 0.0, 128
        %210 = vxpose.xlu0.b32.cont [10/16] 0.0, 128
        %211 = vxpose.xlu0.b32.cont [11/16] 0.0, 128
        %212 = vxpose.xlu0.b32.cont [12/16] 0.0, 128
        %213 = vxpose.xlu0.b32.cont [13/16] 0.0, 128
        %214 = vxpose.xlu0.b32.cont [14/16] 0.0, 128
        %215 = vxpose.xlu0.b32.cont [15/16] 0.0, 128
        %216 = vxpose.xlu0.b32.end [16/16] 0.0, 128
        %v217 = vpop.trf.xlu0
        %v218 = vpop.trf.xlu0
        %v219 = vpop.trf.xlu0
        %v220 = vpop.trf.xlu0
        %v221 = vpop.trf.xlu0
        %v222 = vpop.trf.xlu0
        %v223 = vpop.trf.xlu0
        %v224 = vpop.trf.xlu0
        %v225 = vpop.trf.xlu0
        %v226 = vpop.trf.xlu0
        %v227 = vpop.trf.xlu0
        %v228 = vpop.trf.xlu0
        %v229 = vpop.trf.xlu0
        %v230 = vpop.trf.xlu0
        %v231 = vpop.trf.xlu0
        %v232 = vpop.trf.xlu0
        %vm233 = vcmask 261120
        %v235 = vsel %vm233, %v217, 0
        %v238 = vsel %vm233, %v218, 0
        %240 = vmatpush.msra.mxu0 0.0
        %241 = vmatpush.msra.mxu0 0.0
        %242 = vmatpush.msra.mxu0 0.0
        %243 = vmatpush.msra.mxu0 0.0
        %244 = vmatpush.msra.mxu0 0.0
        %245 = vmatpush.msra.mxu0 0.0
        %246 = vmatpush.msra.mxu0 0.0
        %247 = vmatpush.msra.mxu0 0.0
        %248 = vmatpush.msra.mxu0 0.0
        %249 = vmatpush.msra.mxu0 0.0
        %250 = vmatpush.msra.mxu0 0.0
        %251 = vmatpush.msra.mxu0 0.0
        %v252 = vand.u32 %v194, 4294901760
        %253 = vmatpush.msra.mxu0 %v252
        %v254 = vand.u32 %v193, 4294901760
        %255 = vmatpush.msra.mxu0 %v254
        %v256 = vand.u32 %v192, 4294901760
        %257 = vmatpush.msra.mxu0 %v256
        %v258 = vand.u32 %v191, 4294901760
        %259 = vmatpush.msra.mxu0 %v258
        %v260 = vand.u32 %v235, 4294901760
        %v261 = vsub.f32 %v235, %v260
        %v262 = vand.u32 %v261, 4294901760
        %v263 = vsub.f32 %v261, %v262
        %v264 = vand.u32 %v263, 4294901760
        %265 = vmatmul.f32.gmra.mxu0 %v264
        %v266 = vpop.f32.mrf.mxu0
        %v267 = vadd.f32 0.0, %v266
        %v268 = vand.u32 %v238, 4294901760
        %v269 = vsub.f32 %v238, %v268
        %v270 = vand.u32 %v269, 4294901760
        %v271 = vsub.f32 %v269, %v270
        %v272 = vand.u32 %v271, 4294901760
        %273 = vmatmul.f32.gmra.mxu0 %v272
        %v274 = vpop.f32.mrf.mxu0
        %v275 = vadd.f32 0.0, %v274
        %276 = vdwg.mxu0
        %277 = vmatpush.msra.mxu0 0.0
        %278 = vmatpush.msra.mxu0 0.0
        %279 = vmatpush.msra.mxu0 0.0
        %280 = vmatpush.msra.mxu0 0.0
        %281 = vmatpush.msra.mxu0 0.0
        %282 = vmatpush.msra.mxu0 0.0
        %283 = vmatpush.msra.mxu0 0.0
        %284 = vmatpush.msra.mxu0 0.0
        %285 = vmatpush.msra.mxu0 0.0
        %286 = vmatpush.msra.mxu0 0.0
        %287 = vmatpush.msra.mxu0 0.0
        %288 = vmatpush.msra.mxu0 0.0
        %v289 = vand.u32 %v194, 4294901760
        %v290 = vsub.f32 %v194, %v289
        %v291 = vand.u32 %v290, 4294901760
        %v292 = vsub.f32 %v290, %v291
        %v293 = vand.u32 %v292, 4294901760
        %294 = vmatpush.msra.mxu0 %v293
        %v295 = vand.u32 %v193, 4294901760
        %v296 = vsub.f32 %v193, %v295
        %v297 = vand.u32 %v296, 4294901760
        %v298 = vsub.f32 %v296, %v297
        %v299 = vand.u32 %v298, 4294901760
        %300 = vmatpush.msra.mxu0 %v299
        %v301 = vand.u32 %v192, 4294901760
        %v302 = vsub.f32 %v192, %v301
        %v303 = vand.u32 %v302, 4294901760
        %v304 = vsub.f32 %v302, %v303
        %v305 = vand.u32 %v304, 4294901760
        %306 = vmatpush.msra.mxu0 %v305
        %v307 = vand.u32 %v191, 4294901760
        %v308 = vsub.f32 %v191, %v307
        %v309 = vand.u32 %v308, 4294901760
        %v310 = vsub.f32 %v308, %v309
        %v311 = vand.u32 %v310, 4294901760
        %312 = vmatpush.msra.mxu0 %v311
        %v313 = vand.u32 %v235, 4294901760
        %314 = vmatmul.f32.gmra.mxu0 %v313
        %v315 = vpop.f32.mrf.mxu0
        %v316 = vadd.f32 %v267, %v315
        %v317 = vand.u32 %v238, 4294901760
        %318 = vmatmul.f32.gmra.mxu0 %v317
        %v319 = vpop.f32.mrf.mxu0
        %v320 = vadd.f32 %v275, %v319
        %321 = vdwg.mxu0
        %322 = vmatpush.msra.mxu0 0.0
        %323 = vmatpush.msra.mxu0 0.0
        %324 = vmatpush.msra.mxu0 0.0
        %325 = vmatpush.msra.mxu0 0.0
        %326 = vmatpush.msra.mxu0 0.0
        %327 = vmatpush.msra.mxu0 0.0
        %328 = vmatpush.msra.mxu0 0.0
        %329 = vmatpush.msra.mxu0 0.0
        %330 = vmatpush.msra.mxu0 0.0
        %331 = vmatpush.msra.mxu0 0.0
        %332 = vmatpush.msra.mxu0 0.0
        %333 = vmatpush.msra.mxu0 0.0
        %v334 = vand.u32 %v194, 4294901760
        %v335 = vsub.f32 %v194, %v334
        %336 = vmatpush.msra.mxu0 %v335
        %v337 = vand.u32 %v193, 4294901760
        %v338 = vsub.f32 %v193, %v337
        %339 = vmatpush.msra.mxu0 %v338
        %v340 = vand.u32 %v192, 4294901760
        %v341 = vsub.f32 %v192, %v340
        %342 = vmatpush.msra.mxu0 %v341
        %v343 = vand.u32 %v191, 4294901760
        %v344 = vsub.f32 %v191, %v343
        %345 = vmatpush.msra.mxu0 %v344
        %v346 = vand.u32 %v235, 4294901760
        %v347 = vsub.f32 %v235, %v346
        %348 = vmatmul.f32.gmra.mxu0 %v347
        %v349 = vpop.f32.mrf.mxu0
        %v350 = vadd.f32 %v316, %v349
        %v351 = vand.u32 %v238, 4294901760
        %v352 = vsub.f32 %v238, %v351
        %353 = vmatmul.f32.gmra.mxu0 %v352
        %v354 = vpop.f32.mrf.mxu0
        %v355 = vadd.f32 %v320, %v354
        %356 = vdwg.mxu0
        %357 = vmatpush.msra.mxu0 0.0
        %358 = vmatpush.msra.mxu0 0.0
        %359 = vmatpush.msra.mxu0 0.0
        %360 = vmatpush.msra.mxu0 0.0
        %361 = vmatpush.msra.mxu0 0.0
        %362 = vmatpush.msra.mxu0 0.0
        %363 = vmatpush.msra.mxu0 0.0
        %364 = vmatpush.msra.mxu0 0.0
        %365 = vmatpush.msra.mxu0 0.0
        %366 = vmatpush.msra.mxu0 0.0
        %367 = vmatpush.msra.mxu0 0.0
        %368 = vmatpush.msra.mxu0 0.0
        %v369 = vand.u32 %v194, 4294901760
        %370 = vmatpush.msra.mxu0 %v369
        %v371 = vand.u32 %v193, 4294901760
        %372 = vmatpush.msra.mxu0 %v371
        %v373 = vand.u32 %v192, 4294901760
        %374 = vmatpush.msra.mxu0 %v373
        %v375 = vand.u32 %v191, 4294901760
        %376 = vmatpush.msra.mxu0 %v375
        %v377 = vand.u32 %v235, 4294901760
        %v378 = vsub.f32 %v235, %v377
        %v379 = vand.u32 %v378, 4294901760
        %380 = vmatmul.f32.gmra.mxu0 %v379
        %v381 = vpop.f32.mrf.mxu0
        %v382 = vadd.f32 %v350, %v381
        %v383 = vand.u32 %v238, 4294901760
        %v384 = vsub.f32 %v238, %v383
        %v385 = vand.u32 %v384, 4294901760
        %386 = vmatmul.f32.gmra.mxu0 %v385
        %v387 = vpop.f32.mrf.mxu0
        %v388 = vadd.f32 %v355, %v387
        %389 = vdwg.mxu0
        %390 = vmatpush.msra.mxu0 0.0
        %391 = vmatpush.msra.mxu0 0.0
        %392 = vmatpush.msra.mxu0 0.0
        %393 = vmatpush.msra.mxu0 0.0
        %394 = vmatpush.msra.mxu0 0.0
        %395 = vmatpush.msra.mxu0 0.0
        %396 = vmatpush.msra.mxu0 0.0
        %397 = vmatpush.msra.mxu0 0.0
        %398 = vmatpush.msra.mxu0 0.0
        %399 = vmatpush.msra.mxu0 0.0
        %400 = vmatpush.msra.mxu0 0.0
        %401 = vmatpush.msra.mxu0 0.0
        %v402 = vand.u32 %v194, 4294901760
        %v403 = vsub.f32 %v194, %v402
        %v404 = vand.u32 %v403, 4294901760
        %405 = vmatpush.msra.mxu0 %v404
        %v406 = vand.u32 %v193, 4294901760
        %v407 = vsub.f32 %v193, %v406
        %v408 = vand.u32 %v407, 4294901760
        %409 = vmatpush.msra.mxu0 %v408
        %v410 = vand.u32 %v192, 4294901760
        %v411 = vsub.f32 %v192, %v410
        %v412 = vand.u32 %v411, 4294901760
        %413 = vmatpush.msra.mxu0 %v412
        %v414 = vand.u32 %v191, 4294901760
        %v415 = vsub.f32 %v191, %v414
        %v416 = vand.u32 %v415, 4294901760
        %417 = vmatpush.msra.mxu0 %v416
        %v418 = vand.u32 %v235, 4294901760
        %419 = vmatmul.f32.gmra.mxu0 %v418
        %v420 = vpop.f32.mrf.mxu0
        %v421 = vadd.f32 %v382, %v420
        %v422 = vand.u32 %v238, 4294901760
        %423 = vmatmul.f32.gmra.mxu0 %v422
        %v424 = vpop.f32.mrf.mxu0
        %v425 = vadd.f32 %v388, %v424
        %426 = vdwg.mxu0
        %427 = vmatpush.msra.mxu0 0.0
        %428 = vmatpush.msra.mxu0 0.0
        %429 = vmatpush.msra.mxu0 0.0
        %430 = vmatpush.msra.mxu0 0.0
        %431 = vmatpush.msra.mxu0 0.0
        %432 = vmatpush.msra.mxu0 0.0
        %433 = vmatpush.msra.mxu0 0.0
        %434 = vmatpush.msra.mxu0 0.0
        %435 = vmatpush.msra.mxu0 0.0
        %436 = vmatpush.msra.mxu0 0.0
        %437 = vmatpush.msra.mxu0 0.0
        %438 = vmatpush.msra.mxu0 0.0
        %v439 = vand.u32 %v194, 4294901760
        %440 = vmatpush.msra.mxu0 %v439
        %v441 = vand.u32 %v193, 4294901760
        %442 = vmatpush.msra.mxu0 %v441
        %v443 = vand.u32 %v192, 4294901760
        %444 = vmatpush.msra.mxu0 %v443
        %v445 = vand.u32 %v191, 4294901760
        %446 = vmatpush.msra.mxu0 %v445
        %v447 = vand.u32 %v235, 4294901760
        %448 = vmatmul.f32.gmra.mxu0 %v447
        %v449 = vpop.f32.mrf.mxu0
        %v450 = vadd.f32 %v421, %v449
        %v451 = vand.u32 %v238, 4294901760
        %452 = vmatmul.f32.gmra.mxu0 %v451
        %v453 = vpop.f32.mrf.mxu0
        %v454 = vadd.f32 %v425, %v453
        %455 = vdwg.mxu0
        %v456 = vadd.f32 %v199, %v450
        %v457 = vadd.f32 %v200, %v454
        %vm458 = vcmask 130048
        %459 = vst.msk [vmem:[#allocation2] sm:$0xff] %vm458, %v456
        %460 = vst.msk [vmem:[#allocation2 + $0x8] sm:$0xff] %vm458, %v457
        %v461 = vld [vmem:[#allocation3] sm:$0xff]
        %v462 = vld [vmem:[#allocation3 + $0x8] sm:$0xff]
        %463 = vxpose.xlu0.b32.start [1/16] %v195, 128
        %464 = vxpose.xlu0.b32.cont [2/16] %v196, 128
        %465 = vxpose.xlu0.b32.cont [3/16] %v197, 128
        %466 = vxpose.xlu0.b32.cont [4/16] %v198, 128
        %467 = vxpose.xlu0.b32.cont [5/16] 0.0, 128
        %468 = vxpose.xlu0.b32.cont [6/16] 0.0, 128
        %469 = vxpose.xlu0.b32.cont [7/16] 0.0, 128
        %470 = vxpose.xlu0.b32.cont [8/16] 0.0, 128
        %471 = vxpose.xlu0.b32.cont [9/16] 0.0, 128
        %472 = vxpose.xlu0.b32.cont [10/16] 0.0, 128
        %473 = vxpose.xlu0.b32.cont [11/16] 0.0, 128
        %474 = vxpose.xlu0.b32.cont [12/16] 0.0, 128
        %475 = vxpose.xlu0.b32.cont [13/16] 0.0, 128
        %476 = vxpose.xlu0.b32.cont [14/16] 0.0, 128
        %477 = vxpose.xlu0.b32.cont [15/16] 0.0, 128
        %478 = vxpose.xlu0.b32.end [16/16] 0.0, 128
        %v479 = vpop.trf.xlu0
        %v480 = vpop.trf.xlu0
        %v481 = vpop.trf.xlu0
        %v482 = vpop.trf.xlu0
        %v483 = vpop.trf.xlu0
        %v484 = vpop.trf.xlu0
        %v485 = vpop.trf.xlu0
        %v486 = vpop.trf.xlu0
        %v487 = vpop.trf.xlu0
        %v488 = vpop.trf.xlu0
        %v489 = vpop.trf.xlu0
        %v490 = vpop.trf.xlu0
        %v491 = vpop.trf.xlu0
        %v492 = vpop.trf.xlu0
        %v493 = vpop.trf.xlu0
        %v494 = vpop.trf.xlu0
        %v496 = vsel %vm233, %v479, 0
        %v499 = vsel %vm233, %v480, 0
        %501 = vmatpush.msra.mxu0 0.0
        %502 = vmatpush.msra.mxu0 0.0
        %503 = vmatpush.msra.mxu0 0.0
        %504 = vmatpush.msra.mxu0 0.0
        %505 = vmatpush.msra.mxu0 0.0
        %506 = vmatpush.msra.mxu0 0.0
        %507 = vmatpush.msra.mxu0 0.0
        %508 = vmatpush.msra.mxu0 0.0
        %509 = vmatpush.msra.mxu0 0.0
        %510 = vmatpush.msra.mxu0 0.0
        %511 = vmatpush.msra.mxu0 0.0
        %512 = vmatpush.msra.mxu0 0.0
        %v513 = vand.u32 %v198, 4294901760
        %514 = vmatpush.msra.mxu0 %v513
        %v515 = vand.u32 %v197, 4294901760
        %516 = vmatpush.msra.mxu0 %v515
        %v517 = vand.u32 %v196, 4294901760
        %518 = vmatpush.msra.mxu0 %v517
        %v519 = vand.u32 %v195, 4294901760
        %520 = vmatpush.msra.mxu0 %v519
        %v521 = vand.u32 %v496, 4294901760
        %v522 = vsub.f32 %v496, %v521
        %v523 = vand.u32 %v522, 4294901760
        %v524 = vsub.f32 %v522, %v523
        %v525 = vand.u32 %v524, 4294901760
        %526 = vmatmul.f32.gmra.mxu0 %v525
        %v527 = vpop.f32.mrf.mxu0
        %v528 = vadd.f32 0.0, %v527
        %v529 = vand.u32 %v499, 4294901760
        %v530 = vsub.f32 %v499, %v529
        %v531 = vand.u32 %v530, 4294901760
        %v532 = vsub.f32 %v530, %v531
        %v533 = vand.u32 %v532, 4294901760
        %534 = vmatmul.f32.gmra.mxu0 %v533
        %v535 = vpop.f32.mrf.mxu0
        %v536 = vadd.f32 0.0, %v535
        %537 = vdwg.mxu0
        %538 = vmatpush.msra.mxu0 0.0
        %539 = vmatpush.msra.mxu0 0.0
        %540 = vmatpush.msra.mxu0 0.0
        %541 = vmatpush.msra.mxu0 0.0
        %542 = vmatpush.msra.mxu0 0.0
        %543 = vmatpush.msra.mxu0 0.0
        %544 = vmatpush.msra.mxu0 0.0
        %545 = vmatpush.msra.mxu0 0.0
        %546 = vmatpush.msra.mxu0 0.0
        %547 = vmatpush.msra.mxu0 0.0
        %548 = vmatpush.msra.mxu0 0.0
        %549 = vmatpush.msra.mxu0 0.0
        %v550 = vand.u32 %v198, 4294901760
        %v551 = vsub.f32 %v198, %v550
        %v552 = vand.u32 %v551, 4294901760
        %v553 = vsub.f32 %v551, %v552
        %v554 = vand.u32 %v553, 4294901760
        %555 = vmatpush.msra.mxu0 %v554
        %v556 = vand.u32 %v197, 4294901760
        %v557 = vsub.f32 %v197, %v556
        %v558 = vand.u32 %v557, 4294901760
        %v559 = vsub.f32 %v557, %v558
        %v560 = vand.u32 %v559, 4294901760
        %561 = vmatpush.msra.mxu0 %v560
        %v562 = vand.u32 %v196, 4294901760
        %v563 = vsub.f32 %v196, %v562
        %v564 = vand.u32 %v563, 4294901760
        %v565 = vsub.f32 %v563, %v564
        %v566 = vand.u32 %v565, 4294901760
        %567 = vmatpush.msra.mxu0 %v566
        %v568 = vand.u32 %v195, 4294901760
        %v569 = vsub.f32 %v195, %v568
        %v570 = vand.u32 %v569, 4294901760
        %v571 = vsub.f32 %v569, %v570
        %v572 = vand.u32 %v571, 4294901760
        %573 = vmatpush.msra.mxu0 %v572
        %v574 = vand.u32 %v496, 4294901760
        %575 = vmatmul.f32.gmra.mxu0 %v574
        %v576 = vpop.f32.mrf.mxu0
        %v577 = vadd.f32 %v528, %v576
        %v578 = vand.u32 %v499, 4294901760
        %579 = vmatmul.f32.gmra.mxu0 %v578
        %v580 = vpop.f32.mrf.mxu0
        %v581 = vadd.f32 %v536, %v580
        %582 = vdwg.mxu0
        %583 = vmatpush.msra.mxu0 0.0
        %584 = vmatpush.msra.mxu0 0.0
        %585 = vmatpush.msra.mxu0 0.0
        %586 = vmatpush.msra.mxu0 0.0
        %587 = vmatpush.msra.mxu0 0.0
        %588 = vmatpush.msra.mxu0 0.0
        %589 = vmatpush.msra.mxu0 0.0
        %590 = vmatpush.msra.mxu0 0.0
        %591 = vmatpush.msra.mxu0 0.0
        %592 = vmatpush.msra.mxu0 0.0
        %593 = vmatpush.msra.mxu0 0.0
        %594 = vmatpush.msra.mxu0 0.0
        %v595 = vand.u32 %v198, 4294901760
        %v596 = vsub.f32 %v198, %v595
        %597 = vmatpush.msra.mxu0 %v596
        %v598 = vand.u32 %v197, 4294901760
        %v599 = vsub.f32 %v197, %v598
        %600 = vmatpush.msra.mxu0 %v599
        %v601 = vand.u32 %v196, 4294901760
        %v602 = vsub.f32 %v196, %v601
        %603 = vmatpush.msra.mxu0 %v602
        %v604 = vand.u32 %v195, 4294901760
        %v605 = vsub.f32 %v195, %v604
        %606 = vmatpush.msra.mxu0 %v605
        %v607 = vand.u32 %v496, 4294901760
        %v608 = vsub.f32 %v496, %v607
        %609 = vmatmul.f32.gmra.mxu0 %v608
        %v610 = vpop.f32.mrf.mxu0
        %v611 = vadd.f32 %v577, %v610
        %v612 = vand.u32 %v499, 4294901760
        %v613 = vsub.f32 %v499, %v612
        %614 = vmatmul.f32.gmra.mxu0 %v613
        %v615 = vpop.f32.mrf.mxu0
        %v616 = vadd.f32 %v581, %v615
        %617 = vdwg.mxu0
        %618 = vmatpush.msra.mxu0 0.0
        %619 = vmatpush.msra.mxu0 0.0
        %620 = vmatpush.msra.mxu0 0.0
        %621 = vmatpush.msra.mxu0 0.0
        %622 = vmatpush.msra.mxu0 0.0
        %623 = vmatpush.msra.mxu0 0.0
        %624 = vmatpush.msra.mxu0 0.0
        %625 = vmatpush.msra.mxu0 0.0
        %626 = vmatpush.msra.mxu0 0.0
        %627 = vmatpush.msra.mxu0 0.0
        %628 = vmatpush.msra.mxu0 0.0
        %629 = vmatpush.msra.mxu0 0.0
        %v630 = vand.u32 %v198, 4294901760
        %631 = vmatpush.msra.mxu0 %v630
        %v632 = vand.u32 %v197, 4294901760
        %633 = vmatpush.msra.mxu0 %v632
        %v634 = vand.u32 %v196, 4294901760
        %635 = vmatpush.msra.mxu0 %v634
        %v636 = vand.u32 %v195, 4294901760
        %637 = vmatpush.msra.mxu0 %v636
        %v638 = vand.u32 %v496, 4294901760
        %v639 = vsub.f32 %v496, %v638
        %v640 = vand.u32 %v639, 4294901760
        %641 = vmatmul.f32.gmra.mxu0 %v640
        %v642 = vpop.f32.mrf.mxu0
        %v643 = vadd.f32 %v611, %v642
        %v644 = vand.u32 %v499, 4294901760
        %v645 = vsub.f32 %v499, %v644
        %v646 = vand.u32 %v645, 4294901760
        %647 = vmatmul.f32.gmra.mxu0 %v646
        %v648 = vpop.f32.mrf.mxu0
        %v649 = vadd.f32 %v616, %v648
        %650 = vdwg.mxu0
        %651 = vmatpush.msra.mxu0 0.0
        %652 = vmatpush.msra.mxu0 0.0
        %653 = vmatpush.msra.mxu0 0.0
        %654 = vmatpush.msra.mxu0 0.0
        %655 = vmatpush.msra.mxu0 0.0
        %656 = vmatpush.msra.mxu0 0.0
        %657 = vmatpush.msra.mxu0 0.0
        %658 = vmatpush.msra.mxu0 0.0
        %659 = vmatpush.msra.mxu0 0.0
        %660 = vmatpush.msra.mxu0 0.0
        %661 = vmatpush.msra.mxu0 0.0
        %662 = vmatpush.msra.mxu0 0.0
        %v663 = vand.u32 %v198, 4294901760
        %v664 = vsub.f32 %v198, %v663
        %v665 = vand.u32 %v664, 4294901760
        %666 = vmatpush.msra.mxu0 %v665
        %v667 = vand.u32 %v197, 4294901760
        %v668 = vsub.f32 %v197, %v667
        %v669 = vand.u32 %v668, 4294901760
        %670 = vmatpush.msra.mxu0 %v669
        %v671 = vand.u32 %v196, 4294901760
        %v672 = vsub.f32 %v196, %v671
        %v673 = vand.u32 %v672, 4294901760
        %674 = vmatpush.msra.mxu0 %v673
        %v675 = vand.u32 %v195, 4294901760
        %v676 = vsub.f32 %v195, %v675
        %v677 = vand.u32 %v676, 4294901760
        %678 = vmatpush.msra.mxu0 %v677
        %v679 = vand.u32 %v496, 4294901760
        %680 = vmatmul.f32.gmra.mxu0 %v679
        %v681 = vpop.f32.mrf.mxu0
        %v682 = vadd.f32 %v643, %v681
        %v683 = vand.u32 %v499, 4294901760
        %684 = vmatmul.f32.gmra.mxu0 %v683
        %v685 = vpop.f32.mrf.mxu0
        %v686 = vadd.f32 %v649, %v685
        %687 = vdwg.mxu0
        %688 = vmatpush.msra.mxu0 0.0
        %689 = vmatpush.msra.mxu0 0.0
        %690 = vmatpush.msra.mxu0 0.0
        %691 = vmatpush.msra.mxu0 0.0
        %692 = vmatpush.msra.mxu0 0.0
        %693 = vmatpush.msra.mxu0 0.0
        %694 = vmatpush.msra.mxu0 0.0
        %695 = vmatpush.msra.mxu0 0.0
        %696 = vmatpush.msra.mxu0 0.0
        %697 = vmatpush.msra.mxu0 0.0
        %698 = vmatpush.msra.mxu0 0.0
        %699 = vmatpush.msra.mxu0 0.0
        %v700 = vand.u32 %v198, 4294901760
        %701 = vmatpush.msra.mxu0 %v700
        %v702 = vand.u32 %v197, 4294901760
        %703 = vmatpush.msra.mxu0 %v702
        %v704 = vand.u32 %v196, 4294901760
        %705 = vmatpush.msra.mxu0 %v704
        %v706 = vand.u32 %v195, 4294901760
        %707 = vmatpush.msra.mxu0 %v706
        %v708 = vand.u32 %v496, 4294901760
        %709 = vmatmul.f32.gmra.mxu0 %v708
        %v710 = vpop.f32.mrf.mxu0
        %v711 = vadd.f32 %v682, %v710
        %v712 = vand.u32 %v499, 4294901760
        %713 = vmatmul.f32.gmra.mxu0 %v712
        %v714 = vpop.f32.mrf.mxu0
        %v715 = vadd.f32 %v686, %v714
        %716 = vdwg.mxu0
        %v717 = vadd.f32 %v461, %v711
        %v718 = vadd.f32 %v462, %v715
        %719 = vst.msk [vmem:[#allocation3] sm:$0xff] %vm458, %v717
        %720 = vst.msk [vmem:[#allocation3 + $0x8] sm:$0xff] %vm458, %v718
        %v721 = vld [vmem:[#allocation4] sm:$0xff]
        %v722 = vld [vmem:[#allocation4 + $0x8] sm:$0xff]
        %723 = vmatpush.msra.mxu0 0.0
        %724 = vmatpush.msra.mxu0 0.0
        %725 = vmatpush.msra.mxu0 0.0
        %726 = vmatpush.msra.mxu0 0.0
        %727 = vmatpush.msra.mxu0 0.0
        %728 = vmatpush.msra.mxu0 0.0
        %729 = vmatpush.msra.mxu0 0.0
        %730 = vmatpush.msra.mxu0 0.0
        %731 = vmatpush.msra.mxu0 0.0
        %732 = vmatpush.msra.mxu0 0.0
        %733 = vmatpush.msra.mxu0 0.0
        %734 = vmatpush.msra.mxu0 0.0
        %v735 = vand.u32 %v198, 4294901760
        %736 = vmatpush.msra.mxu0 %v735
        %v737 = vand.u32 %v197, 4294901760
        %738 = vmatpush.msra.mxu0 %v737
        %v739 = vand.u32 %v196, 4294901760
        %740 = vmatpush.msra.mxu0 %v739
        %v741 = vand.u32 %v195, 4294901760
        %742 = vmatpush.msra.mxu0 %v741
        %v743 = vand.u32 %v235, 4294901760
        %v744 = vsub.f32 %v235, %v743
        %v745 = vand.u32 %v744, 4294901760
        %v746 = vsub.f32 %v744, %v745
        %v747 = vand.u32 %v746, 4294901760
        %748 = vmatmul.f32.gmra.mxu0 %v747
        %v749 = vpop.f32.mrf.mxu0
        %v750 = vadd.f32 0.0, %v749
        %v751 = vand.u32 %v238, 4294901760
        %v752 = vsub.f32 %v238, %v751
        %v753 = vand.u32 %v752, 4294901760
        %v754 = vsub.f32 %v752, %v753
        %v755 = vand.u32 %v754, 4294901760
        %756 = vmatmul.f32.gmra.mxu0 %v755
        %v757 = vpop.f32.mrf.mxu0
        %v758 = vadd.f32 0.0, %v757
        %759 = vdwg.mxu0
        %760 = vmatpush.msra.mxu0 0.0
        %761 = vmatpush.msra.mxu0 0.0
        %762 = vmatpush.msra.mxu0 0.0
        %763 = vmatpush.msra.mxu0 0.0
        %764 = vmatpush.msra.mxu0 0.0
        %765 = vmatpush.msra.mxu0 0.0
        %766 = vmatpush.msra.mxu0 0.0
        %767 = vmatpush.msra.mxu0 0.0
        %768 = vmatpush.msra.mxu0 0.0
        %769 = vmatpush.msra.mxu0 0.0
        %770 = vmatpush.msra.mxu0 0.0
        %771 = vmatpush.msra.mxu0 0.0
        %v772 = vand.u32 %v198, 4294901760
        %v773 = vsub.f32 %v198, %v772
        %v774 = vand.u32 %v773, 4294901760
        %v775 = vsub.f32 %v773, %v774
        %v776 = vand.u32 %v775, 4294901760
        %777 = vmatpush.msra.mxu0 %v776
        %v778 = vand.u32 %v197, 4294901760
        %v779 = vsub.f32 %v197, %v778
        %v780 = vand.u32 %v779, 4294901760
        %v781 = vsub.f32 %v779, %v780
        %v782 = vand.u32 %v781, 4294901760
        %783 = vmatpush.msra.mxu0 %v782
        %v784 = vand.u32 %v196, 4294901760
        %v785 = vsub.f32 %v196, %v784
        %v786 = vand.u32 %v785, 4294901760
        %v787 = vsub.f32 %v785, %v786
        %v788 = vand.u32 %v787, 4294901760
        %789 = vmatpush.msra.mxu0 %v788
        %v790 = vand.u32 %v195, 4294901760
        %v791 = vsub.f32 %v195, %v790
        %v792 = vand.u32 %v791, 4294901760
        %v793 = vsub.f32 %v791, %v792
        %v794 = vand.u32 %v793, 4294901760
        %795 = vmatpush.msra.mxu0 %v794
        %v796 = vand.u32 %v235, 4294901760
        %797 = vmatmul.f32.gmra.mxu0 %v796
        %v798 = vpop.f32.mrf.mxu0
        %v799 = vadd.f32 %v750, %v798
        %v800 = vand.u32 %v238, 4294901760
        %801 = vmatmul.f32.gmra.mxu0 %v800
        %v802 = vpop.f32.mrf.mxu0
        %v803 = vadd.f32 %v758, %v802
        %804 = vdwg.mxu0
        %805 = vmatpush.msra.mxu0 0.0
        %806 = vmatpush.msra.mxu0 0.0
        %807 = vmatpush.msra.mxu0 0.0
        %808 = vmatpush.msra.mxu0 0.0
        %809 = vmatpush.msra.mxu0 0.0
        %810 = vmatpush.msra.mxu0 0.0
        %811 = vmatpush.msra.mxu0 0.0
        %812 = vmatpush.msra.mxu0 0.0
        %813 = vmatpush.msra.mxu0 0.0
        %814 = vmatpush.msra.mxu0 0.0
        %815 = vmatpush.msra.mxu0 0.0
        %816 = vmatpush.msra.mxu0 0.0
        %v817 = vand.u32 %v198, 4294901760
        %v818 = vsub.f32 %v198, %v817
        %819 = vmatpush.msra.mxu0 %v818
        %v820 = vand.u32 %v197, 4294901760
        %v821 = vsub.f32 %v197, %v820
        %822 = vmatpush.msra.mxu0 %v821
        %v823 = vand.u32 %v196, 4294901760
        %v824 = vsub.f32 %v196, %v823
        %825 = vmatpush.msra.mxu0 %v824
        %v826 = vand.u32 %v195, 4294901760
        %v827 = vsub.f32 %v195, %v826
        %828 = vmatpush.msra.mxu0 %v827
        %v829 = vand.u32 %v235, 4294901760
        %v830 = vsub.f32 %v235, %v829
        %831 = vmatmul.f32.gmra.mxu0 %v830
        %v832 = vpop.f32.mrf.mxu0
        %v833 = vadd.f32 %v799, %v832
        %v834 = vand.u32 %v238, 4294901760
        %v835 = vsub.f32 %v238, %v834
        %836 = vmatmul.f32.gmra.mxu0 %v835
        %v837 = vpop.f32.mrf.mxu0
        %v838 = vadd.f32 %v803, %v837
        %839 = vdwg.mxu0
        %840 = vmatpush.msra.mxu0 0.0
        %841 = vmatpush.msra.mxu0 0.0
        %842 = vmatpush.msra.mxu0 0.0
        %843 = vmatpush.msra.mxu0 0.0
        %844 = vmatpush.msra.mxu0 0.0
        %845 = vmatpush.msra.mxu0 0.0
        %846 = vmatpush.msra.mxu0 0.0
        %847 = vmatpush.msra.mxu0 0.0
        %848 = vmatpush.msra.mxu0 0.0
        %849 = vmatpush.msra.mxu0 0.0
        %850 = vmatpush.msra.mxu0 0.0
        %851 = vmatpush.msra.mxu0 0.0
        %v852 = vand.u32 %v198, 4294901760
        %853 = vmatpush.msra.mxu0 %v852
        %v854 = vand.u32 %v197, 4294901760
        %855 = vmatpush.msra.mxu0 %v854
        %v856 = vand.u32 %v196, 4294901760
        %857 = vmatpush.msra.mxu0 %v856
        %v858 = vand.u32 %v195, 4294901760
        %859 = vmatpush.msra.mxu0 %v858
        %v860 = vand.u32 %v235, 4294901760
        %v861 = vsub.f32 %v235, %v860
        %v862 = vand.u32 %v861, 4294901760
        %863 = vmatmul.f32.gmra.mxu0 %v862
        %v864 = vpop.f32.mrf.mxu0
        %v865 = vadd.f32 %v833, %v864
        %v866 = vand.u32 %v238, 4294901760
        %v867 = vsub.f32 %v238, %v866
        %v868 = vand.u32 %v867, 4294901760
        %869 = vmatmul.f32.gmra.mxu0 %v868
        %v870 = vpop.f32.mrf.mxu0
        %v871 = vadd.f32 %v838, %v870
        %872 = vdwg.mxu0
        %873 = vmatpush.msra.mxu0 0.0
        %874 = vmatpush.msra.mxu0 0.0
        %875 = vmatpush.msra.mxu0 0.0
        %876 = vmatpush.msra.mxu0 0.0
        %877 = vmatpush.msra.mxu0 0.0
        %878 = vmatpush.msra.mxu0 0.0
        %879 = vmatpush.msra.mxu0 0.0
        %880 = vmatpush.msra.mxu0 0.0
        %881 = vmatpush.msra.mxu0 0.0
        %882 = vmatpush.msra.mxu0 0.0
        %883 = vmatpush.msra.mxu0 0.0
        %884 = vmatpush.msra.mxu0 0.0
        %v885 = vand.u32 %v198, 4294901760
        %v886 = vsub.f32 %v198, %v885
        %v887 = vand.u32 %v886, 4294901760
        %888 = vmatpush.msra.mxu0 %v887
        %v889 = vand.u32 %v197, 4294901760
        %v890 = vsub.f32 %v197, %v889
        %v891 = vand.u32 %v890, 4294901760
        %892 = vmatpush.msra.mxu0 %v891
        %v893 = vand.u32 %v196, 4294901760
        %v894 = vsub.f32 %v196, %v893
        %v895 = vand.u32 %v894, 4294901760
        %896 = vmatpush.msra.mxu0 %v895
        %v897 = vand.u32 %v195, 4294901760
        %v898 = vsub.f32 %v195, %v897
        %v899 = vand.u32 %v898, 4294901760
        %900 = vmatpush.msra.mxu0 %v899
        %v901 = vand.u32 %v235, 4294901760
        %902 = vmatmul.f32.gmra.mxu0 %v901
        %v903 = vpop.f32.mrf.mxu0
        %v904 = vadd.f32 %v865, %v903
        %v905 = vand.u32 %v238, 4294901760
        %906 = vmatmul.f32.gmra.mxu0 %v905
        %v907 = vpop.f32.mrf.mxu0
        %v908 = vadd.f32 %v871, %v907
        %909 = vdwg.mxu0
        %910 = vmatpush.msra.mxu0 0.0
        %911 = vmatpush.msra.mxu0 0.0
        %912 = vmatpush.msra.mxu0 0.0
        %913 = vmatpush.msra.mxu0 0.0
        %914 = vmatpush.msra.mxu0 0.0
        %915 = vmatpush.msra.mxu0 0.0
        %916 = vmatpush.msra.mxu0 0.0
        %917 = vmatpush.msra.mxu0 0.0
        %918 = vmatpush.msra.mxu0 0.0
        %919 = vmatpush.msra.mxu0 0.0
        %920 = vmatpush.msra.mxu0 0.0
        %921 = vmatpush.msra.mxu0 0.0
        %v922 = vand.u32 %v198, 4294901760
        %923 = vmatpush.msra.mxu0 %v922
        %v924 = vand.u32 %v197, 4294901760
        %925 = vmatpush.msra.mxu0 %v924
        %v926 = vand.u32 %v196, 4294901760
        %927 = vmatpush.msra.mxu0 %v926
        %v928 = vand.u32 %v195, 4294901760
        %929 = vmatpush.msra.mxu0 %v928
        %v930 = vand.u32 %v235, 4294901760
        %931 = vmatmul.f32.gmra.mxu0 %v930
        %v932 = vpop.f32.mrf.mxu0
        %v933 = vadd.f32 %v904, %v932
        %v934 = vand.u32 %v238, 4294901760
        %935 = vmatmul.f32.gmra.mxu0 %v934
        %v936 = vpop.f32.mrf.mxu0
        %v937 = vadd.f32 %v908, %v936
        %938 = vdwg.mxu0
        %v939 = vadd.f32 %v721, %v933
        %v940 = vadd.f32 %v722, %v937
        %941 = vst.msk [vmem:[#allocation4] sm:$0xff] %vm458, %v939
        %942 = vst.msk [vmem:[#allocation4 + $0x8] sm:$0xff] %vm458, %v940
        %v943 = vld [vmem:[#allocation5] sm:$0x1]
        %v944 = vsel %vm458, %v191, 0.0
        %v945 = vsel %vm458, %v192, 0.0
        %v946 = vadd.f32 %v944, %v945
        %v947 = vsel %vm458, %v193, 0.0
        %v948 = vadd.f32 %v946, %v947
        %v949 = vsel %vm458, %v194, 0.0
        %v950 = vadd.f32 %v948, %v949
        %v951 = vrot.slane %v950, 4
        %v952 = vadd.f32 %v950, %v951
        %v953 = vrot.slane %v952, 2
        %v954 = vadd.f32 %v952, %v953
        %v955 = vrot.slane %v954, 1
        %v956 = vadd.f32 %v954, %v955
        %v957 = vadd.f32 %v943, %v956
        %vm958 = vcmask 122880
        %959 = vst.msk [vmem:[#allocation5] sm:$0x1] %vm958, %v957
        %v960 = vld [vmem:[#allocation6] sm:$0x1]
        %v961 = vsel %vm458, %v195, 0.0
        %v962 = vsel %vm458, %v196, 0.0
        %v963 = vadd.f32 %v961, %v962
        %v964 = vsel %vm458, %v197, 0.0
        %v965 = vadd.f32 %v963, %v964
        %v966 = vsel %vm458, %v198, 0.0
        %v967 = vadd.f32 %v965, %v966
        %v968 = vrot.slane %v967, 4
        %v969 = vadd.f32 %v967, %v968
        %v970 = vrot.slane %v969, 2
        %v971 = vadd.f32 %v969, %v970
        %v972 = vrot.slane %v971, 1
        %v973 = vadd.f32 %v971, %v972
        %v974 = vadd.f32 %v960, %v973
        %975 = vst.msk [vmem:[#allocation6] sm:$0x1] %vm958, %v974
        %p976 = scmp.eq.s32.totalorder %s14, 3
        // Predicated region
        $region33: #{tpu_custom_call.1} parent=27 // pred_check
          %p977 = pneg %p976
        $region34: #{tpu_custom_call.1} parent=27 // pred_check_branch
          %979 = sbr.rel (%p977) target = $region36
        $region35: #{tpu_custom_call.1} parent=27 // pred_region
          %v980 = vld [vmem:[#allocation5] sm:$0x1]
          %981 = vxpose.xlu0.b32.start [1/16] %v980, 128
          %982 = vxpose.xlu0.b32.cont [2/16] 0.0, 128
          %983 = vxpose.xlu0.b32.cont [3/16] 0.0, 128
          %984 = vxpose.xlu0.b32.cont [4/16] 0.0, 128
          %985 = vxpose.xlu0.b32.cont [5/16] 0.0, 128
          %986 = vxpose.xlu0.b32.cont [6/16] 0.0, 128
          %987 = vxpose.xlu0.b32.cont [7/16] 0.0, 128
          %988 = vxpose.xlu0.b32.cont [8/16] 0.0, 128
          %989 = vxpose.xlu0.b32.cont [9/16] 0.0, 128
          %990 = vxpose.xlu0.b32.cont [10/16] 0.0, 128
          %991 = vxpose.xlu0.b32.cont [11/16] 0.0, 128
          %992 = vxpose.xlu0.b32.cont [12/16] 0.0, 128
          %993 = vxpose.xlu0.b32.cont [13/16] 0.0, 128
          %994 = vxpose.xlu0.b32.cont [14/16] 0.0, 128
          %995 = vxpose.xlu0.b32.cont [15/16] 0.0, 128
          %996 = vxpose.xlu0.b32.end [16/16] 0.0, 128
          %v997 = vpop.trf.xlu0
          %v998 = vpop.trf.xlu0
          %v999 = vpop.trf.xlu0
          %v1000 = vpop.trf.xlu0
          %v1001 = vpop.trf.xlu0
          %v1002 = vpop.trf.xlu0
          %v1003 = vpop.trf.xlu0
          %v1004 = vpop.trf.xlu0
          %v1005 = vpop.trf.xlu0
          %v1006 = vpop.trf.xlu0
          %v1007 = vpop.trf.xlu0
          %v1008 = vpop.trf.xlu0
          %v1009 = vpop.trf.xlu0
          %v1010 = vpop.trf.xlu0
          %v1011 = vpop.trf.xlu0
          %v1012 = vpop.trf.xlu0
          %vm1013 = vcmask 7168
          %v1015 = vsel %vm1013, %v997, 0
          %v1018 = vsel %vm1013, %v998, 0
          %vm1020 = vcmask 1040384
          %v1022 = vsel %vm1020, %v980, 0
          %1024 = vmatpush.msra.mxu0 0.0
          %1025 = vmatpush.msra.mxu0 0.0
          %1026 = vmatpush.msra.mxu0 0.0
          %1027 = vmatpush.msra.mxu0 0.0
          %1028 = vmatpush.msra.mxu0 0.0
          %1029 = vmatpush.msra.mxu0 0.0
          %1030 = vmatpush.msra.mxu0 0.0
          %1031 = vmatpush.msra.mxu0 0.0
          %1032 = vmatpush.msra.mxu0 0.0
          %1033 = vmatpush.msra.mxu0 0.0
          %1034 = vmatpush.msra.mxu0 0.0
          %1035 = vmatpush.msra.mxu0 0.0
          %1036 = vmatpush.msra.mxu0 0.0
          %1037 = vmatpush.msra.mxu0 0.0
          %1038 = vmatpush.msra.mxu0 0.0
          %v1039 = vand.u32 %v1022, 4294901760
          %1040 = vmatpush.msra.mxu0 %v1039
          %v1041 = vand.u32 %v1015, 4294901760
          %v1042 = vsub.f32 %v1015, %v1041
          %v1043 = vand.u32 %v1042, 4294901760
          %v1044 = vsub.f32 %v1042, %v1043
          %v1045 = vand.u32 %v1044, 4294901760
          %1046 = vmatmul.f32.gmra.mxu0 %v1045
          %v1047 = vpop.f32.mrf.mxu0
          %v1048 = vadd.f32 0.0, %v1047
          %v1049 = vand.u32 %v1018, 4294901760
          %v1050 = vsub.f32 %v1018, %v1049
          %v1051 = vand.u32 %v1050, 4294901760
          %v1052 = vsub.f32 %v1050, %v1051
          %v1053 = vand.u32 %v1052, 4294901760
          %1054 = vmatmul.f32.gmra.mxu0 %v1053
          %v1055 = vpop.f32.mrf.mxu0
          %v1056 = vadd.f32 0.0, %v1055
          %1057 = vdwg.mxu0
          %1058 = vmatpush.msra.mxu0 0.0
          %1059 = vmatpush.msra.mxu0 0.0
          %1060 = vmatpush.msra.mxu0 0.0
          %1061 = vmatpush.msra.mxu0 0.0
          %1062 = vmatpush.msra.mxu0 0.0
          %1063 = vmatpush.msra.mxu0 0.0
          %1064 = vmatpush.msra.mxu0 0.0
          %1065 = vmatpush.msra.mxu0 0.0
          %1066 = vmatpush.msra.mxu0 0.0
          %1067 = vmatpush.msra.mxu0 0.0
          %1068 = vmatpush.msra.mxu0 0.0
          %1069 = vmatpush.msra.mxu0 0.0
          %1070 = vmatpush.msra.mxu0 0.0
          %1071 = vmatpush.msra.mxu0 0.0
          %1072 = vmatpush.msra.mxu0 0.0
          %v1073 = vand.u32 %v1022, 4294901760
          %v1074 = vsub.f32 %v1022, %v1073
          %v1075 = vand.u32 %v1074, 4294901760
          %v1076 = vsub.f32 %v1074, %v1075
          %v1077 = vand.u32 %v1076, 4294901760
          %1078 = vmatpush.msra.mxu0 %v1077
          %v1079 = vand.u32 %v1015, 4294901760
          %1080 = vmatmul.f32.gmra.mxu0 %v1079
          %v1081 = vpop.f32.mrf.mxu0
          %v1082 = vadd.f32 %v1048, %v1081
          %v1083 = vand.u32 %v1018, 4294901760
          %1084 = vmatmul.f32.gmra.mxu0 %v1083
          %v1085 = vpop.f32.mrf.mxu0
          %v1086 = vadd.f32 %v1056, %v1085
          %1087 = vdwg.mxu0
          %1088 = vmatpush.msra.mxu0 0.0
          %1089 = vmatpush.msra.mxu0 0.0
          %1090 = vmatpush.msra.mxu0 0.0
          %1091 = vmatpush.msra.mxu0 0.0
          %1092 = vmatpush.msra.mxu0 0.0
          %1093 = vmatpush.msra.mxu0 0.0
          %1094 = vmatpush.msra.mxu0 0.0
          %1095 = vmatpush.msra.mxu0 0.0
          %1096 = vmatpush.msra.mxu0 0.0
          %1097 = vmatpush.msra.mxu0 0.0
          %1098 = vmatpush.msra.mxu0 0.0
          %1099 = vmatpush.msra.mxu0 0.0
          %1100 = vmatpush.msra.mxu0 0.0
          %1101 = vmatpush.msra.mxu0 0.0
          %1102 = vmatpush.msra.mxu0 0.0
          %v1103 = vand.u32 %v1022, 4294901760
          %v1104 = vsub.f32 %v1022, %v1103
          %1105 = vmatpush.msra.mxu0 %v1104
          %v1106 = vand.u32 %v1015, 4294901760
          %v1107 = vsub.f32 %v1015, %v1106
          %1108 = vmatmul.f32.gmra.mxu0 %v1107
          %v1109 = vpop.f32.mrf.mxu0
          %v1110 = vadd.f32 %v1082, %v1109
          %v1111 = vand.u32 %v1018, 4294901760
          %v1112 = vsub.f32 %v1018, %v1111
          %1113 = vmatmul.f32.gmra.mxu0 %v1112
          %v1114 = vpop.f32.mrf.mxu0
          %v1115 = vadd.f32 %v1086, %v1114
          %1116 = vdwg.mxu0
          %1117 = vmatpush.msra.mxu0 0.0
          %1118 = vmatpush.msra.mxu0 0.0
          %1119 = vmatpush.msra.mxu0 0.0
          %1120 = vmatpush.msra.mxu0 0.0
          %1121 = vmatpush.msra.mxu0 0.0
          %1122 = vmatpush.msra.mxu0 0.0
          %1123 = vmatpush.msra.mxu0 0.0
          %1124 = vmatpush.msra.mxu0 0.0
          %1125 = vmatpush.msra.mxu0 0.0
          %1126 = vmatpush.msra.mxu0 0.0
          %1127 = vmatpush.msra.mxu0 0.0
          %1128 = vmatpush.msra.mxu0 0.0
          %1129 = vmatpush.msra.mxu0 0.0
          %1130 = vmatpush.msra.mxu0 0.0
          %1131 = vmatpush.msra.mxu0 0.0
          %v1132 = vand.u32 %v1022, 4294901760
          %1133 = vmatpush.msra.mxu0 %v1132
          %v1134 = vand.u32 %v1015, 4294901760
          %v1135 = vsub.f32 %v1015, %v1134
          %v1136 = vand.u32 %v1135, 4294901760
          %1137 = vmatmul.f32.gmra.mxu0 %v1136
          %v1138 = vpop.f32.mrf.mxu0
          %v1139 = vadd.f32 %v1110, %v1138
          %v1140 = vand.u32 %v1018, 4294901760
          %v1141 = vsub.f32 %v1018, %v1140
          %v1142 = vand.u32 %v1141, 4294901760
          %1143 = vmatmul.f32.gmra.mxu0 %v1142
          %v1144 = vpop.f32.mrf.mxu0
          %v1145 = vadd.f32 %v1115, %v1144
          %1146 = vdwg.mxu0
          %1147 = vmatpush.msra.mxu0 0.0
          %1148 = vmatpush.msra.mxu0 0.0
          %1149 = vmatpush.msra.mxu0 0.0
          %1150 = vmatpush.msra.mxu0 0.0
          %1151 = vmatpush.msra.mxu0 0.0
          %1152 = vmatpush.msra.mxu0 0.0
          %1153 = vmatpush.msra.mxu0 0.0
          %1154 = vmatpush.msra.mxu0 0.0
          %1155 = vmatpush.msra.mxu0 0.0
          %1156 = vmatpush.msra.mxu0 0.0
          %1157 = vmatpush.msra.mxu0 0.0
          %1158 = vmatpush.msra.mxu0 0.0
          %1159 = vmatpush.msra.mxu0 0.0
          %1160 = vmatpush.msra.mxu0 0.0
          %1161 = vmatpush.msra.mxu0 0.0
          %v1162 = vand.u32 %v1022, 4294901760
          %v1163 = vsub.f32 %v1022, %v1162
          %v1164 = vand.u32 %v1163, 4294901760
          %1165 = vmatpush.msra.mxu0 %v1164
          %v1166 = vand.u32 %v1015, 4294901760
          %1167 = vmatmul.f32.gmra.mxu0 %v1166
          %v1168 = vpop.f32.mrf.mxu0
          %v1169 = vadd.f32 %v1139, %v1168
          %v1170 = vand.u32 %v1018, 4294901760
          %1171 = vmatmul.f32.gmra.mxu0 %v1170
          %v1172 = vpop.f32.mrf.mxu0
          %v1173 = vadd.f32 %v1145, %v1172
          %1174 = vdwg.mxu0
          %1175 = vmatpush.msra.mxu0 0.0
          %1176 = vmatpush.msra.mxu0 0.0
          %1177 = vmatpush.msra.mxu0 0.0
          %1178 = vmatpush.msra.mxu0 0.0
          %1179 = vmatpush.msra.mxu0 0.0
          %1180 = vmatpush.msra.mxu0 0.0
          %1181 = vmatpush.msra.mxu0 0.0
          %1182 = vmatpush.msra.mxu0 0.0
          %1183 = vmatpush.msra.mxu0 0.0
          %1184 = vmatpush.msra.mxu0 0.0
          %1185 = vmatpush.msra.mxu0 0.0
          %1186 = vmatpush.msra.mxu0 0.0
          %1187 = vmatpush.msra.mxu0 0.0
          %1188 = vmatpush.msra.mxu0 0.0
          %1189 = vmatpush.msra.mxu0 0.0
          %v1190 = vand.u32 %v1022, 4294901760
          %1191 = vmatpush.msra.mxu0 %v1190
          %v1192 = vand.u32 %v1015, 4294901760
          %1193 = vmatmul.f32.gmra.mxu0 %v1192
          %v1194 = vpop.f32.mrf.mxu0
          %v1195 = vadd.f32 %v1169, %v1194
          %v1196 = vand.u32 %v1018, 4294901760
          %1197 = vmatmul.f32.gmra.mxu0 %v1196
          %v1198 = vpop.f32.mrf.mxu0
          %v1199 = vadd.f32 %v1173, %v1198
          %1200 = vdwg.mxu0
          %v1201 = vld [vmem:[#allocation6] sm:$0x1]
          %1202 = vxpose.xlu0.b32.start [1/16] %v1201, 128
          %1203 = vxpose.xlu0.b32.cont [2/16] 0.0, 128
          %1204 = vxpose.xlu0.b32.cont [3/16] 0.0, 128
          %1205 = vxpose.xlu0.b32.cont [4/16] 0.0, 128
          %1206 = vxpose.xlu0.b32.cont [5/16] 0.0, 128
          %1207 = vxpose.xlu0.b32.cont [6/16] 0.0, 128
          %1208 = vxpose.xlu0.b32.cont [7/16] 0.0, 128
          %1209 = vxpose.xlu0.b32.cont [8/16] 0.0, 128
          %1210 = vxpose.xlu0.b32.cont [9/16] 0.0, 128
          %1211 = vxpose.xlu0.b32.cont [10/16] 0.0, 128
          %1212 = vxpose.xlu0.b32.cont [11/16] 0.0, 128
          %1213 = vxpose.xlu0.b32.cont [12/16] 0.0, 128
          %1214 = vxpose.xlu0.b32.cont [13/16] 0.0, 128
          %1215 = vxpose.xlu0.b32.cont [14/16] 0.0, 128
          %1216 = vxpose.xlu0.b32.cont [15/16] 0.0, 128
          %1217 = vxpose.xlu0.b32.end [16/16] 0.0, 128
          %v1218 = vpop.trf.xlu0
          %v1219 = vpop.trf.xlu0
          %v1220 = vpop.trf.xlu0
          %v1221 = vpop.trf.xlu0
          %v1222 = vpop.trf.xlu0
          %v1223 = vpop.trf.xlu0
          %v1224 = vpop.trf.xlu0
          %v1225 = vpop.trf.xlu0
          %v1226 = vpop.trf.xlu0
          %v1227 = vpop.trf.xlu0
          %v1228 = vpop.trf.xlu0
          %v1229 = vpop.trf.xlu0
          %v1230 = vpop.trf.xlu0
          %v1231 = vpop.trf.xlu0
          %v1232 = vpop.trf.xlu0
          %v1233 = vpop.trf.xlu0
          %v1235 = vsel %vm1013, %v1218, 0
          %v1238 = vsel %vm1013, %v1219, 0
          %v1241 = vsel %vm1020, %v1201, 0
          %1243 = vmatpush.msra.mxu0 0.0
          %1244 = vmatpush.msra.mxu0 0.0
          %1245 = vmatpush.msra.mxu0 0.0
          %1246 = vmatpush.msra.mxu0 0.0
          %1247 = vmatpush.msra.mxu0 0.0
          %1248 = vmatpush.msra.mxu0 0.0
          %1249 = vmatpush.msra.mxu0 0.0
          %1250 = vmatpush.msra.mxu0 0.0
          %1251 = vmatpush.msra.mxu0 0.0
          %1252 = vmatpush.msra.mxu0 0.0
          %1253 = vmatpush.msra.mxu0 0.0
          %1254 = vmatpush.msra.mxu0 0.0
          %1255 = vmatpush.msra.mxu0 0.0
          %1256 = vmatpush.msra.mxu0 0.0
          %1257 = vmatpush.msra.mxu0 0.0
          %v1258 = vand.u32 %v1241, 4294901760
          %1259 = vmatpush.msra.mxu0 %v1258
          %v1260 = vand.u32 %v1235, 4294901760
          %v1261 = vsub.f32 %v1235, %v1260
          %v1262 = vand.u32 %v1261, 4294901760
          %v1263 = vsub.f32 %v1261, %v1262
          %v1264 = vand.u32 %v1263, 4294901760
          %1265 = vmatmul.f32.gmra.mxu0 %v1264
          %v1266 = vpop.f32.mrf.mxu0
          %v1267 = vadd.f32 0.0, %v1266
          %v1268 = vand.u32 %v1238, 4294901760
          %v1269 = vsub.f32 %v1238, %v1268
          %v1270 = vand.u32 %v1269, 4294901760
          %v1271 = vsub.f32 %v1269, %v1270
          %v1272 = vand.u32 %v1271, 4294901760
          %1273 = vmatmul.f32.gmra.mxu0 %v1272
          %v1274 = vpop.f32.mrf.mxu0
          %v1275 = vadd.f32 0.0, %v1274
          %1276 = vdwg.mxu0
          %1277 = vmatpush.msra.mxu0 0.0
          %1278 = vmatpush.msra.mxu0 0.0
          %1279 = vmatpush.msra.mxu0 0.0
          %1280 = vmatpush.msra.mxu0 0.0
          %1281 = vmatpush.msra.mxu0 0.0
          %1282 = vmatpush.msra.mxu0 0.0
          %1283 = vmatpush.msra.mxu0 0.0
          %1284 = vmatpush.msra.mxu0 0.0
          %1285 = vmatpush.msra.mxu0 0.0
          %1286 = vmatpush.msra.mxu0 0.0
          %1287 = vmatpush.msra.mxu0 0.0
          %1288 = vmatpush.msra.mxu0 0.0
          %1289 = vmatpush.msra.mxu0 0.0
          %1290 = vmatpush.msra.mxu0 0.0
          %1291 = vmatpush.msra.mxu0 0.0
          %v1292 = vand.u32 %v1241, 4294901760
          %v1293 = vsub.f32 %v1241, %v1292
          %v1294 = vand.u32 %v1293, 4294901760
          %v1295 = vsub.f32 %v1293, %v1294
          %v1296 = vand.u32 %v1295, 4294901760
          %1297 = vmatpush.msra.mxu0 %v1296
          %v1298 = vand.u32 %v1235, 4294901760
          %1299 = vmatmul.f32.gmra.mxu0 %v1298
          %v1300 = vpop.f32.mrf.mxu0
          %v1301 = vadd.f32 %v1267, %v1300
          %v1302 = vand.u32 %v1238, 4294901760
          %1303 = vmatmul.f32.gmra.mxu0 %v1302
          %v1304 = vpop.f32.mrf.mxu0
          %v1305 = vadd.f32 %v1275, %v1304
          %1306 = vdwg.mxu0
          %1307 = vmatpush.msra.mxu0 0.0
          %1308 = vmatpush.msra.mxu0 0.0
          %1309 = vmatpush.msra.mxu0 0.0
          %1310 = vmatpush.msra.mxu0 0.0
          %1311 = vmatpush.msra.mxu0 0.0
          %1312 = vmatpush.msra.mxu0 0.0
          %1313 = vmatpush.msra.mxu0 0.0
          %1314 = vmatpush.msra.mxu0 0.0
          %1315 = vmatpush.msra.mxu0 0.0
          %1316 = vmatpush.msra.mxu0 0.0
          %1317 = vmatpush.msra.mxu0 0.0
          %1318 = vmatpush.msra.mxu0 0.0
          %1319 = vmatpush.msra.mxu0 0.0
          %1320 = vmatpush.msra.mxu0 0.0
          %1321 = vmatpush.msra.mxu0 0.0
          %v1322 = vand.u32 %v1241, 4294901760
          %v1323 = vsub.f32 %v1241, %v1322
          %1324 = vmatpush.msra.mxu0 %v1323
          %v1325 = vand.u32 %v1235, 4294901760
          %v1326 = vsub.f32 %v1235, %v1325
          %1327 = vmatmul.f32.gmra.mxu0 %v1326
          %v1328 = vpop.f32.mrf.mxu0
          %v1329 = vadd.f32 %v1301, %v1328
          %v1330 = vand.u32 %v1238, 4294901760
          %v1331 = vsub.f32 %v1238, %v1330
          %1332 = vmatmul.f32.gmra.mxu0 %v1331
          %v1333 = vpop.f32.mrf.mxu0
          %v1334 = vadd.f32 %v1305, %v1333
          %1335 = vdwg.mxu0
          %1336 = vmatpush.msra.mxu0 0.0
          %1337 = vmatpush.msra.mxu0 0.0
          %1338 = vmatpush.msra.mxu0 0.0
          %1339 = vmatpush.msra.mxu0 0.0
          %1340 = vmatpush.msra.mxu0 0.0
          %1341 = vmatpush.msra.mxu0 0.0
          %1342 = vmatpush.msra.mxu0 0.0
          %1343 = vmatpush.msra.mxu0 0.0
          %1344 = vmatpush.msra.mxu0 0.0
          %1345 = vmatpush.msra.mxu0 0.0
          %1346 = vmatpush.msra.mxu0 0.0
          %1347 = vmatpush.msra.mxu0 0.0
          %1348 = vmatpush.msra.mxu0 0.0
          %1349 = vmatpush.msra.mxu0 0.0
          %1350 = vmatpush.msra.mxu0 0.0
          %v1351 = vand.u32 %v1241, 4294901760
          %1352 = vmatpush.msra.mxu0 %v1351
          %v1353 = vand.u32 %v1235, 4294901760
          %v1354 = vsub.f32 %v1235, %v1353
          %v1355 = vand.u32 %v1354, 4294901760
          %1356 = vmatmul.f32.gmra.mxu0 %v1355
          %v1357 = vpop.f32.mrf.mxu0
          %v1358 = vadd.f32 %v1329, %v1357
          %v1359 = vand.u32 %v1238, 4294901760
          %v1360 = vsub.f32 %v1238, %v1359
          %v1361 = vand.u32 %v1360, 4294901760
          %1362 = vmatmul.f32.gmra.mxu0 %v1361
          %v1363 = vpop.f32.mrf.mxu0
          %v1364 = vadd.f32 %v1334, %v1363
          %1365 = vdwg.mxu0
          %1366 = vmatpush.msra.mxu0 0.0
          %1367 = vmatpush.msra.mxu0 0.0
          %1368 = vmatpush.msra.mxu0 0.0
          %1369 = vmatpush.msra.mxu0 0.0
          %1370 = vmatpush.msra.mxu0 0.0
          %1371 = vmatpush.msra.mxu0 0.0
          %1372 = vmatpush.msra.mxu0 0.0
          %1373 = vmatpush.msra.mxu0 0.0
          %1374 = vmatpush.msra.mxu0 0.0
          %1375 = vmatpush.msra.mxu0 0.0
          %1376 = vmatpush.msra.mxu0 0.0
          %1377 = vmatpush.msra.mxu0 0.0
          %1378 = vmatpush.msra.mxu0 0.0
          %1379 = vmatpush.msra.mxu0 0.0
          %1380 = vmatpush.msra.mxu0 0.0
          %v1381 = vand.u32 %v1241, 4294901760
          %v1382 = vsub.f32 %v1241, %v1381
          %v1383 = vand.u32 %v1382, 4294901760
          %1384 = vmatpush.msra.mxu0 %v1383
          %v1385 = vand.u32 %v1235, 4294901760
          %1386 = vmatmul.f32.gmra.mxu0 %v1385
          %v1387 = vpop.f32.mrf.mxu0
          %v1388 = vadd.f32 %v1358, %v1387
          %v1389 = vand.u32 %v1238, 4294901760
          %1390 = vmatmul.f32.gmra.mxu0 %v1389
          %v1391 = vpop.f32.mrf.mxu0
          %v1392 = vadd.f32 %v1364, %v1391
          %1393 = vdwg.mxu0
          %1394 = vmatpush.msra.mxu0 0.0
          %1395 = vmatpush.msra.mxu0 0.0
          %1396 = vmatpush.msra.mxu0 0.0
          %1397 = vmatpush.msra.mxu0 0.0
          %1398 = vmatpush.msra.mxu0 0.0
          %1399 = vmatpush.msra.mxu0 0.0
          %1400 = vmatpush.msra.mxu0 0.0
          %1401 = vmatpush.msra.mxu0 0.0
          %1402 = vmatpush.msra.mxu0 0.0
          %1403 = vmatpush.msra.mxu0 0.0
          %1404 = vmatpush.msra.mxu0 0.0
          %1405 = vmatpush.msra.mxu0 0.0
          %1406 = vmatpush.msra.mxu0 0.0
          %1407 = vmatpush.msra.mxu0 0.0
          %1408 = vmatpush.msra.mxu0 0.0
          %v1409 = vand.u32 %v1241, 4294901760
          %1410 = vmatpush.msra.mxu0 %v1409
          %v1411 = vand.u32 %v1235, 4294901760
          %1412 = vmatmul.f32.gmra.mxu0 %v1411
          %v1413 = vpop.f32.mrf.mxu0
          %v1414 = vadd.f32 %v1388, %v1413
          %v1415 = vand.u32 %v1238, 4294901760
          %1416 = vmatmul.f32.gmra.mxu0 %v1415
          %v1417 = vpop.f32.mrf.mxu0
          %v1418 = vadd.f32 %v1392, %v1417
          %1419 = vdwg.mxu0
          %1420 = vmatpush.msra.mxu0 0.0
          %1421 = vmatpush.msra.mxu0 0.0
          %1422 = vmatpush.msra.mxu0 0.0
          %1423 = vmatpush.msra.mxu0 0.0
          %1424 = vmatpush.msra.mxu0 0.0
          %1425 = vmatpush.msra.mxu0 0.0
          %1426 = vmatpush.msra.mxu0 0.0
          %1427 = vmatpush.msra.mxu0 0.0
          %1428 = vmatpush.msra.mxu0 0.0
          %1429 = vmatpush.msra.mxu0 0.0
          %1430 = vmatpush.msra.mxu0 0.0
          %1431 = vmatpush.msra.mxu0 0.0
          %1432 = vmatpush.msra.mxu0 0.0
          %1433 = vmatpush.msra.mxu0 0.0
          %1434 = vmatpush.msra.mxu0 0.0
          %v1435 = vand.u32 %v1241, 4294901760
          %1436 = vmatpush.msra.mxu0 %v1435
          %v1437 = vand.u32 %v1015, 4294901760
          %v1438 = vsub.f32 %v1015, %v1437
          %v1439 = vand.u32 %v1438, 4294901760
          %v1440 = vsub.f32 %v1438, %v1439
          %v1441 = vand.u32 %v1440, 4294901760
          %1442 = vmatmul.f32.gmra.mxu0 %v1441
          %v1443 = vpop.f32.mrf.mxu0
          %v1444 = vadd.f32 0.0, %v1443
          %v1445 = vand.u32 %v1018, 4294901760
          %v1446 = vsub.f32 %v1018, %v1445
          %v1447 = vand.u32 %v1446, 4294901760
          %v1448 = vsub.f32 %v1446, %v1447
          %v1449 = vand.u32 %v1448, 4294901760
          %1450 = vmatmul.f32.gmra.mxu0 %v1449
          %v1451 = vpop.f32.mrf.mxu0
          %v1452 = vadd.f32 0.0, %v1451
          %1453 = vdwg.mxu0
          %1454 = vmatpush.msra.mxu0 0.0
          %1455 = vmatpush.msra.mxu0 0.0
          %1456 = vmatpush.msra.mxu0 0.0
          %1457 = vmatpush.msra.mxu0 0.0
          %1458 = vmatpush.msra.mxu0 0.0
          %1459 = vmatpush.msra.mxu0 0.0
          %1460 = vmatpush.msra.mxu0 0.0
          %1461 = vmatpush.msra.mxu0 0.0
          %1462 = vmatpush.msra.mxu0 0.0
          %1463 = vmatpush.msra.mxu0 0.0
          %1464 = vmatpush.msra.mxu0 0.0
          %1465 = vmatpush.msra.mxu0 0.0
          %1466 = vmatpush.msra.mxu0 0.0
          %1467 = vmatpush.msra.mxu0 0.0
          %1468 = vmatpush.msra.mxu0 0.0
          %v1469 = vand.u32 %v1241, 4294901760
          %v1470 = vsub.f32 %v1241, %v1469
          %v1471 = vand.u32 %v1470, 4294901760
          %v1472 = vsub.f32 %v1470, %v1471
          %v1473 = vand.u32 %v1472, 4294901760
          %1474 = vmatpush.msra.mxu0 %v1473
          %v1475 = vand.u32 %v1015, 4294901760
          %1476 = vmatmul.f32.gmra.mxu0 %v1475
          %v1477 = vpop.f32.mrf.mxu0
          %v1478 = vadd.f32 %v1444, %v1477
          %v1479 = vand.u32 %v1018, 4294901760
          %1480 = vmatmul.f32.gmra.mxu0 %v1479
          %v1481 = vpop.f32.mrf.mxu0
          %v1482 = vadd.f32 %v1452, %v1481
          %1483 = vdwg.mxu0
          %1484 = vmatpush.msra.mxu0 0.0
          %1485 = vmatpush.msra.mxu0 0.0
          %1486 = vmatpush.msra.mxu0 0.0
          %1487 = vmatpush.msra.mxu0 0.0
          %1488 = vmatpush.msra.mxu0 0.0
          %1489 = vmatpush.msra.mxu0 0.0
          %1490 = vmatpush.msra.mxu0 0.0
          %1491 = vmatpush.msra.mxu0 0.0
          %1492 = vmatpush.msra.mxu0 0.0
          %1493 = vmatpush.msra.mxu0 0.0
          %1494 = vmatpush.msra.mxu0 0.0
          %1495 = vmatpush.msra.mxu0 0.0
          %1496 = vmatpush.msra.mxu0 0.0
          %1497 = vmatpush.msra.mxu0 0.0
          %1498 = vmatpush.msra.mxu0 0.0
          %v1499 = vand.u32 %v1241, 4294901760
          %v1500 = vsub.f32 %v1241, %v1499
          %1501 = vmatpush.msra.mxu0 %v1500
          %v1502 = vand.u32 %v1015, 4294901760
          %v1503 = vsub.f32 %v1015, %v1502
          %1504 = vmatmul.f32.gmra.mxu0 %v1503
          %v1505 = vpop.f32.mrf.mxu0
          %v1506 = vadd.f32 %v1478, %v1505
          %v1507 = vand.u32 %v1018, 4294901760
          %v1508 = vsub.f32 %v1018, %v1507
          %1509 = vmatmul.f32.gmra.mxu0 %v1508
          %v1510 = vpop.f32.mrf.mxu0
          %v1511 = vadd.f32 %v1482, %v1510
          %1512 = vdwg.mxu0
          %1513 = vmatpush.msra.mxu0 0.0
          %1514 = vmatpush.msra.mxu0 0.0
          %1515 = vmatpush.msra.mxu0 0.0
          %1516 = vmatpush.msra.mxu0 0.0
          %1517 = vmatpush.msra.mxu0 0.0
          %1518 = vmatpush.msra.mxu0 0.0
          %1519 = vmatpush.msra.mxu0 0.0
          %1520 = vmatpush.msra.mxu0 0.0
          %1521 = vmatpush.msra.mxu0 0.0
          %1522 = vmatpush.msra.mxu0 0.0
          %1523 = vmatpush.msra.mxu0 0.0
          %1524 = vmatpush.msra.mxu0 0.0
          %1525 = vmatpush.msra.mxu0 0.0
          %1526 = vmatpush.msra.mxu0 0.0
          %1527 = vmatpush.msra.mxu0 0.0
          %v1528 = vand.u32 %v1241, 4294901760
          %1529 = vmatpush.msra.mxu0 %v1528
          %v1530 = vand.u32 %v1015, 4294901760
          %v1531 = vsub.f32 %v1015, %v1530
          %v1532 = vand.u32 %v1531, 4294901760
          %1533 = vmatmul.f32.gmra.mxu0 %v1532
          %v1534 = vpop.f32.mrf.mxu0
          %v1535 = vadd.f32 %v1506, %v1534
          %v1536 = vand.u32 %v1018, 4294901760
          %v1537 = vsub.f32 %v1018, %v1536
          %v1538 = vand.u32 %v1537, 4294901760
          %1539 = vmatmul.f32.gmra.mxu0 %v1538
          %v1540 = vpop.f32.mrf.mxu0
          %v1541 = vadd.f32 %v1511, %v1540
          %1542 = vdwg.mxu0
          %1543 = vmatpush.msra.mxu0 0.0
          %1544 = vmatpush.msra.mxu0 0.0
          %1545 = vmatpush.msra.mxu0 0.0
          %1546 = vmatpush.msra.mxu0 0.0
          %1547 = vmatpush.msra.mxu0 0.0
          %1548 = vmatpush.msra.mxu0 0.0
          %1549 = vmatpush.msra.mxu0 0.0
          %1550 = vmatpush.msra.mxu0 0.0
          %1551 = vmatpush.msra.mxu0 0.0
          %1552 = vmatpush.msra.mxu0 0.0
          %1553 = vmatpush.msra.mxu0 0.0
          %1554 = vmatpush.msra.mxu0 0.0
          %1555 = vmatpush.msra.mxu0 0.0
          %1556 = vmatpush.msra.mxu0 0.0
          %1557 = vmatpush.msra.mxu0 0.0
          %v1558 = vand.u32 %v1241, 4294901760
          %v1559 = vsub.f32 %v1241, %v1558
          %v1560 = vand.u32 %v1559, 4294901760
          %1561 = vmatpush.msra.mxu0 %v1560
          %v1562 = vand.u32 %v1015, 4294901760
          %1563 = vmatmul.f32.gmra.mxu0 %v1562
          %v1564 = vpop.f32.mrf.mxu0
          %v1565 = vadd.f32 %v1535, %v1564
          %v1566 = vand.u32 %v1018, 4294901760
          %1567 = vmatmul.f32.gmra.mxu0 %v1566
          %v1568 = vpop.f32.mrf.mxu0
          %v1569 = vadd.f32 %v1541, %v1568
          %1570 = vdwg.mxu0
          %1571 = vmatpush.msra.mxu0 0.0
          %1572 = vmatpush.msra.mxu0 0.0
          %1573 = vmatpush.msra.mxu0 0.0
          %1574 = vmatpush.msra.mxu0 0.0
          %1575 = vmatpush.msra.mxu0 0.0
          %1576 = vmatpush.msra.mxu0 0.0
          %1577 = vmatpush.msra.mxu0 0.0
          %1578 = vmatpush.msra.mxu0 0.0
          %1579 = vmatpush.msra.mxu0 0.0
          %1580 = vmatpush.msra.mxu0 0.0
          %1581 = vmatpush.msra.mxu0 0.0
          %1582 = vmatpush.msra.mxu0 0.0
          %1583 = vmatpush.msra.mxu0 0.0
          %1584 = vmatpush.msra.mxu0 0.0
          %1585 = vmatpush.msra.mxu0 0.0
          %v1586 = vand.u32 %v1241, 4294901760
          %1587 = vmatpush.msra.mxu0 %v1586
          %v1588 = vand.u32 %v1015, 4294901760
          %1589 = vmatmul.f32.gmra.mxu0 %v1588
          %v1590 = vpop.f32.mrf.mxu0
          %v1591 = vadd.f32 %v1565, %v1590
          %v1592 = vand.u32 %v1018, 4294901760
          %1593 = vmatmul.f32.gmra.mxu0 %v1592
          %v1594 = vpop.f32.mrf.mxu0
          %v1595 = vadd.f32 %v1569, %v1594
          %1596 = vdwg.mxu0
          %v1597 = vlaneseq
          %v1598 = vand.u32 %v1597, 127
          %vm1599 = vcmp.eq.s32.totalorder %v177, %v1598
          %vm1600 = vcmp.eq.s32.totalorder %v178, %v1598
          %v1601 = vsel %vm1599, 0.0001, 0.0
          %v1602 = vsel %vm1600, 0.0001, 0.0
          %v1603 = vld [vmem:[#allocation2] sm:$0xff]
          %v1604 = vld [vmem:[#allocation2 + $0x8] sm:$0xff]
          %v1605 = vrcp.pop 128.0
          %v1606 = vmul.f32 128.0, %v1605
          %v1607 = vsub.f32 1.0, %v1606
          %v1608 = vmul.f32 %v1605, %v1607
          %v1609 = vadd.f32 %v1605, %v1608
          %vm1610 = vweird.f32 %v1605
          %v1611 = vsel %vm1610, %v1605, %v1609
          %v1612 = vmul.f32 %v1195, %v1611
          %v1613 = vmul.f32 %v1199, %v1611
          %v1614 = vsub.f32 %v1603, %v1612
          %v1615 = vsub.f32 %v1604, %v1613
          %v1616 = vrcp.pop 127.0
          %v1617 = vmul.f32 127.0, %v1616
          %v1618 = vsub.f32 1.0, %v1617
          %v1619 = vmul.f32 %v1616, %v1618
          %v1620 = vadd.f32 %v1616, %v1619
          %vm1621 = vweird.f32 %v1616
          %v1622 = vsel %vm1621, %v1616, %v1620
          %v1623 = vmul.f32 %v1614, %v1622
          %v1624 = vmul.f32 %v1615, %v1622
          %v1625 = vadd.f32 %v1623, %v1601
          %v1626 = vadd.f32 %v1624, %v1602
          %1627 = vst.msk [vmem:[#allocation7] sm:$0xff] %vm458, %v1625
          %1628 = vst.msk [vmem:[#allocation7 + $0x8] sm:$0xff] %vm458, %v1626
          %v1629 = vld [vmem:[#allocation3] sm:$0xff]
          %v1630 = vld [vmem:[#allocation3 + $0x8] sm:$0xff]
          %v1631 = vmul.f32 %v1414, %v1611
          %v1632 = vmul.f32 %v1418, %v1611
          %v1633 = vsub.f32 %v1629, %v1631
          %v1634 = vsub.f32 %v1630, %v1632
          %v1635 = vmul.f32 %v1633, %v1622
          %v1636 = vmul.f32 %v1634, %v1622
          %v1637 = vadd.f32 %v1635, %v1601
          %v1638 = vadd.f32 %v1636, %v1602
          %s1639 = scalar_lea.vmem [#allocation7], 16
          %1640 = vst.msk [vmem:[%s1639] sm:$0xff] %vm458, %v1637
          %1641 = vst.msk [vmem:[%s1639 + $0x8] sm:$0xff] %vm458, %v1638
          %v1642 = vld [vmem:[#allocation4] sm:$0xff]
          %v1643 = vld [vmem:[#allocation4 + $0x8] sm:$0xff]
          %v1644 = vmul.f32 %v1591, %v1611
          %v1645 = vmul.f32 %v1595, %v1611
          %v1646 = vsub.f32 %v1642, %v1644
          %v1647 = vsub.f32 %v1643, %v1645
          %v1648 = vmul.f32 %v1646, %v1622
          %v1649 = vmul.f32 %v1647, %v1622
          %s1650 = scalar_lea.vmem [#allocation7], 32
          %1651 = vst.msk [vmem:[%s1650] sm:$0xff] %vm458, %v1648
          %1652 = vst.msk [vmem:[%s1650 + $0x8] sm:$0xff] %vm458, %v1649
        $region36: #{tpu_custom_call.1} parent=27 // pred_fallthru
          _
        // Predicated region
        $region37: #{tpu_custom_call.1} parent=27 // pred_check
          %p1653 = pneg %p79
        $region38: #{tpu_custom_call.1} parent=27 // pred_check_branch
          %1655 = sbr.rel (%p1653) target = $region40
        $region39: #{tpu_custom_call.1} parent=27 // pred_region
          %1657 = vsyncadd [#allocation8], 0
          %s1658 = sshll.u32 [#allocation7], 4
          %s1659 = int_to_ptr.vmem [resolvable:$true] %s1658
          %s1660 = sshll.u32 %s2, 4
          %s1661 = int_to_ptr.hbm [resolvable:$true] %s1660
          %1666 = dma.vmem_to_hbm [thread:$0]  %s1659, 768, %s1661, [#allocation8], 128, 128, 8
        $region40: #{tpu_custom_call.1} parent=27 // pred_fallthru
          _
        // Predicated region
        $region41: #{tpu_custom_call.1} parent=27 // pred_check
          %p1667 = pneg %p79
        $region42: #{tpu_custom_call.1} parent=27 // pred_check_branch
          %1669 = sbr.rel (%p1667) target = $region44
        $region43: #{tpu_custom_call.1} parent=27 // pred_region
          %1671 = dma.done [#allocation8], 768
        $region44: #{tpu_custom_call.1} parent=27 // pred_fallthru
          _
      $region28: #{tpu_custom_call.1} parent=5 // pred_fallthru
        _
      %p1672 = scmp.le.s32.totalorder 2, %s9
      // Predicated region
      $region45: #{tpu_custom_call.1} parent=5 // pred_check
        %p1673 = pneg %p1672
      $region46: #{tpu_custom_call.1} parent=5 // pred_check_branch
        %1675 = sbr.rel (%p1673) target = $region48
      $region47: #{tpu_custom_call.1} parent=5 // pred_region
        %s1676 = ssub.s32 %s9, 2
      $region48: #{tpu_custom_call.1} parent=5 // pred_fallthru
        _
    $region6: #{tpu_custom_call.1} parent=1 // loop_footer
      %s13 = sadd.s32 1, %s9
    $region7: #{tpu_custom_call.1} parent=1 // loop_footer_branch
      %8 = sbr.rel target = $region3
    $region8: #{tpu_custom_call.1} parent=1 // loop_exit
      _
    %1677 = vsyncpa [#allocation8], 1
    %s1678 = scalar_lea.sflag [#allocation8], 1
    %1679 = vsyncpa %s1678, 1

</llo_original>
